<compile_context>
chip_gen: v5e
topology: v5e:2x2
jax: 0.10.0
libtpu: 0.0.40
codegen_flags: <defaults>
</compile_context>

<pallas_src>
import functools
import math

import jax
import jax.numpy as jnp
from jax.experimental import pallas as pl
from jax.experimental.pallas import tpu as pltpu

NEG_SLOPE = 0.2            # LeakyReLU slope used by the module
DEFAULT_TILE_N = 512       # weight-column tile per grid step (multiple of 128)
DEFAULT_BATCH_TILE = 256   # max batch rows per grid step (multiple of 8)


def _round_up(x, m):
    return ((x + m - 1) // m) * m


# ---------------------------------------------------------------------------
# Parameters
# ---------------------------------------------------------------------------

def init_classifier_params(key, latent_dim=512, n_layer=4, n_hidden=2048):
    """nn.Linear-style init (U(-1/sqrt(fan_in), +1/sqrt(fan_in))).
    Returns list of (W, b) with W stored as (in, out) = torch weight.T, f32."""
    if n_layer == 0:
        dims = [(latent_dim, 1)]
    else:
        dims = ([(latent_dim, n_hidden)]
                + [(n_hidden, n_hidden)] * (n_layer - 1)
                + [(n_hidden, 2)])
    params = []
    for fan_in, fan_out in dims:
        key, kw, kb = jax.random.split(key, 3)
        bound = 1.0 / math.sqrt(fan_in)
        w = jax.random.uniform(kw, (fan_in, fan_out), jnp.float32, -bound, bound)
        b = jax.random.uniform(kb, (fan_out,), jnp.float32, -bound, bound)
        params.append((w, b))
    return params


def pack_classifier_params(params, tile_n=DEFAULT_TILE_N):
    """One-time packing: pad each layer to lane-friendly padded shapes, cast
    weights to bf16 (HBM weight stream is the bottleneck), keep biases f32.
    Returns (weights, biases, layer_cfgs)."""
    n = len(params)
    weights, biases, cfgs = [], [], []
    start = 0
    prev_out_p = None
    for i, (w, b) in enumerate(params):
        d_in, d_out = int(w.shape[0]), int(w.shape[1])
        d_in_p = d_in if i == 0 else prev_out_p      # rows match prev layer's padded width
        if d_out <= tile_n:
            d_out_p = _round_up(d_out, 128)          # pad up, never shrink tiles
            tile = d_out_p
        else:
            d_out_p = _round_up(d_out, tile_n)
            tile = tile_n
        ntiles = d_out_p // tile
        wp = jnp.zeros((d_in_p, d_out_p), jnp.float32).at[:d_in, :d_out].set(w)
        bp = jnp.zeros((1, d_out_p), jnp.float32).at[0, :d_out].set(b)
        weights.append(wp.astype(jnp.bfloat16))
        biases.append(bp)
        cfgs.append(dict(start=start, ntiles=ntiles, tile=tile,
                         d_in_p=d_in_p, d_out=d_out, d_out_p=d_out_p,
                         apply_act=(n > 1 and i < n - 1), is_last=(i == n - 1)))
        start += ntiles
        prev_out_p = d_out_p

    # Fused kernel keeps hidden activations in one shared VMEM scratch layout,
    # so all non-final layers must agree on output tiling (true here: every
    # hidden width is n_hidden).
    hidden = [c for c in cfgs if not c["is_last"]]
    if hidden:
        t0, n0 = hidden[0]["tile"], hidden[0]["ntiles"]
        assert all(c["tile"] == t0 and c["ntiles"] == n0 for c in hidden), (
            "fused kernel assumes all hidden layers share one output tiling")
    return weights, biases, cfgs


# ---------------------------------------------------------------------------
# Index maps (clamped so a layer's weight block index only moves during that
# layer's slice of the flat tile axis -> no redundant weight DMA).
# ---------------------------------------------------------------------------

def _x_map(bt, t):
    del t
    return (bt, 0)


def _col_tile_map(bt, t, *, start, ntiles):
    del bt
    idx = jnp.minimum(jnp.maximum(t - start, 0), ntiles - 1)
    return (0, idx)


def _out_map(bt, t, *, start, ntiles):
    idx = jnp.minimum(jnp.maximum(t - start, 0), ntiles - 1)
    return (bt, idx)


# ---------------------------------------------------------------------------
# Fused MLP kernel
# ---------------------------------------------------------------------------

def _make_mlp_kernel(cfgs, batch_tile):
    n_layers = len(cfgs)

    def kernel(*refs):
        x_ref = refs[0]
        w_refs = refs[1:1 + n_layers]
        b_refs = refs[1 + n_layers:1 + 2 * n_layers]
        o_ref = refs[1 + 2 * n_layers]
        acts = (refs[1 + 2 * n_layers + 1], refs[1 + 2 * n_layers + 2])

        t = pl.program_id(1)   # flattened (layer, output-column-tile) index

        for layer_idx, cfg in enumerate(cfgs):
            in_range = jnp.logical_and(t >= cfg["start"],
                                       t < cfg["start"] + cfg["ntiles"])

            @pl.when(in_range)
            def _(layer_idx=layer_idx, cfg=cfg):
                if layer_idx == 0:
                    # x block is already bf16.
                    y = jnp.dot(x_ref[...], w_refs[0][...],
                                preferred_element_type=jnp.float32)
                else:
                    prev = cfgs[layer_idx - 1]
                    src = acts[(layer_idx - 1) % 2]      # (ntiles, TB, tile) bf16
                    y = jnp.zeros((batch_tile, cfg["tile"]), jnp.float32)
                    for k in range(prev["ntiles"]):      # static unroll
                        wk = w_refs[layer_idx][pl.ds(k * prev["tile"],
                                                     prev["tile"]), :]
                        y = y + jnp.dot(src[k], wk,
                                        preferred_element_type=jnp.float32)
                y = y + b_refs[layer_idx][...]           # (1, tile) broadcasts
                if cfg["apply_act"]:
                    y = jnp.where(y >= 0.0, y, NEG_SLOPE * y)
                if cfg["is_last"]:
                    o_ref[...] = y.astype(o_ref.dtype)
                else:
                    dst = acts[layer_idx % 2]
                    dst[t - cfg["start"]] = y.astype(dst.dtype)

    return kernel


# ---------------------------------------------------------------------------
# Forward
# ---------------------------------------------------------------------------

def classifier_forward(weights, biases, cfgs, x, batch_tile=DEFAULT_BATCH_TILE):
    n_layers = len(weights)
    B, d_in0 = x.shape
    assert d_in0 == cfgs[0]["d_in_p"]

    if B <= batch_tile:
        tb, b_p = B, B
    else:
        tb = batch_tile
        b_p = _round_up(B, tb)
    if b_p != B:
        x = jnp.pad(x, ((0, b_p - B), (0, 0)))
    x = x.astype(jnp.bfloat16)   # bf16 activations end-to-end (f32 accumulation)

    last = cfgs[-1]
    total_tiles = last["start"] + last["ntiles"]
    n_btiles = b_p // tb

    hidden = [c for c in cfgs if not c["is_last"]]
    if hidden:
        h_ntiles, h_tile = hidden[0]["ntiles"], hidden[0]["tile"]
    else:
        h_ntiles, h_tile = 1, 128   # dummy scratch for the n_layer == 0 case

    in_specs = [pl.BlockSpec((tb, d_in0), _x_map)]
    for cfg in cfgs:
        in_specs.append(pl.BlockSpec(
            (cfg["d_in_p"], cfg["tile"]),
            functools.partial(_col_tile_map, start=cfg["start"],
                              ntiles=cfg["ntiles"])))
    for cfg in cfgs:
        in_specs.append(pl.BlockSpec(
            (1, cfg["tile"]),
            functools.partial(_col_tile_map, start=cfg["start"],
                              ntiles=cfg["ntiles"])))

    out_specs = pl.BlockSpec(
        (tb, last["tile"]),
        functools.partial(_out_map, start=last["start"], ntiles=last["ntiles"]))

    flops = 2 * b_p * sum(c["d_in_p"] * c["d_out_p"] for c in cfgs)
    weight_bytes = sum(c["d_in_p"] * c["d_out_p"] * 2 + c["d_out_p"] * 4
                       for c in cfgs)
    cost = pl.CostEstimate(
        flops=flops,
        transcendentals=0,
        bytes_accessed=(b_p * d_in0 * 2
                        + n_btiles * weight_bytes
                        + b_p * last["d_out_p"] * 4))

    out = pl.pallas_call(
        _make_mlp_kernel(cfgs, tb),
        out_shape=jax.ShapeDtypeStruct((b_p, last["d_out_p"]), jnp.float32),
        grid_spec=pltpu.PrefetchScalarGridSpec(
            num_scalar_prefetch=0,
            grid=(n_btiles, total_tiles),
            in_specs=in_specs,
            out_specs=out_specs,
            scratch_shapes=[
                pltpu.VMEM((h_ntiles, tb, h_tile), jnp.bfloat16),
                pltpu.VMEM((h_ntiles, tb, h_tile), jnp.bfloat16),
            ],
        ),
        compiler_params=pltpu.CompilerParams(
            # Megacore split adds no bandwidth for this weight-stream-bound
            # kernel (per review); keep both axes sequential.
            dimension_semantics=("arbitrary", "arbitrary"),
            vmem_limit_bytes=32 * 1024 * 1024,
        ),
        cost_estimate=cost,
    )(x, *weights, *biases)

    return out[:B, :last["d_out"]]


# ---------------------------------------------------------------------------
# Pure-JAX reference (mirrors the kernel's bf16 activation / f32 accum math)
# ---------------------------------------------------------------------------

def _reference_forward(params, x, negative_slope=NEG_SLOPE):
    n = len(params)
    h = x.astype(jnp.bfloat16)
    y = None
    for i, (w, b) in enumerate(params):
        y = jnp.dot(h, w.astype(jnp.bfloat16),
                    preferred_element_type=jnp.float32) + b
        if n > 1 and i < n - 1:
            y = jnp.where(y >= 0.0, y, negative_slope * y)
            h = y.astype(jnp.bfloat16)
    return y


if __name__ == "__main__":
    key = jax.random.PRNGKey(0)

    def check(latent_dim, n_layer, n_hidden, batch, tile_n, batch_tile):
        k1, k2 = jax.random.split(jax.random.fold_in(key, latent_dim * 1000 + n_layer))
        params = init_classifier_params(k1, latent_dim, n_layer, n_hidden)
        weights, biases, cfgs = pack_classifier_params(params, tile_n=tile_n)
        x = jax.random.normal(k2, (batch, latent_dim), jnp.float32)
        out = classifier_forward(weights, biases, cfgs, x, batch_tile=batch_tile)
        out = jax.block_until_ready(out)
        ref = _reference_forward(params, x)
        n_out = 1 if n_layer == 0 else 2
        assert out.shape == (batch, n_out), out.shape
        assert jnp.allclose(out, ref, atol=2e-2, rtol=2e-2), (
            f"mismatch: max abs err {jnp.max(jnp.abs(out - ref))}")

    # Small shapes, but exercising: multi-tile weight streaming (grid_n > 1
    # per layer), the lane-padded final layer (2 -> 128), multiple batch tiles
    # with batch padding, and the n_layer == 0 single-Linear path.
    check(latent_dim=64, n_layer=3, n_hidden=256, batch=8,  tile_n=128, batch_tile=256)
    check(latent_dim=64, n_layer=3, n_hidden=256, batch=20, tile_n=128, batch_tile=8)
    check(latent_dim=32, n_layer=0, n_hidden=256, batch=8,  tile_n=128, batch_tile=256)

    print("KERNEL_OK")
</pallas_src>

<mosaic_0001>
module attributes {stable_mosaic.version = 11 : i64} {
  func.func @kernel(%arg0: i32, %arg1: i32, %arg2: memref<8x64xbf16, #tpu.memory_space<vmem>>, %arg3: memref<64x128xbf16, #tpu.memory_space<vmem>>, %arg4: memref<256x128xbf16, #tpu.memory_space<vmem>>, %arg5: memref<256x128xbf16, #tpu.memory_space<vmem>>, %arg6: memref<256x128xbf16, #tpu.memory_space<vmem>>, %arg7: memref<1x128xf32, #tpu.memory_space<vmem>>, %arg8: memref<1x128xf32, #tpu.memory_space<vmem>>, %arg9: memref<1x128xf32, #tpu.memory_space<vmem>>, %arg10: memref<1x128xf32, #tpu.memory_space<vmem>>, %arg11: memref<8x128xf32, #tpu.memory_space<vmem>>, %arg12: memref<2x8x128xbf16, #tpu.memory_space<vmem>>, %arg13: memref<2x8x128xbf16, #tpu.memory_space<vmem>>) attributes {dimension_semantics = [#tpu.dimension_semantics<arbitrary>, #tpu.dimension_semantics<arbitrary>], iteration_bounds = array<i64: 1, 7>, scalar_prefetch = 0 : i64, scratch_operands = 2 : i64, tpu.core_type = #tpu.core_type<tc>, window_params = [{transform_indices = @transform_0, window_bounds = array<i64: 8, 64>}, {transform_indices = @transform_1, window_bounds = array<i64: 64, 128>}, {transform_indices = @transform_2, window_bounds = array<i64: 256, 128>}, {transform_indices = @transform_3, window_bounds = array<i64: 256, 128>}, {transform_indices = @transform_4, window_bounds = array<i64: 256, 128>}, {transform_indices = @transform_5, window_bounds = array<i64: 1, 128>}, {transform_indices = @transform_6, window_bounds = array<i64: 1, 128>}, {transform_indices = @transform_7, window_bounds = array<i64: 1, 128>}, {transform_indices = @transform_8, window_bounds = array<i64: 1, 128>}, {transform_indices = @transform_9, window_bounds = array<i64: 8, 128>}]} {
    %c0_i32 = arith.constant 0 : i32
    %0 = arith.cmpi sge, %arg1, %c0_i32 : i32
    %c2_i32 = arith.constant 2 : i32
    %1 = arith.cmpi slt, %arg1, %c2_i32 : i32
    %2 = arith.andi %0, %1 : i1
    %3 = arith.extui %2 : i1 to i32
    %c0_i32_0 = arith.constant 0 : i32
    %4 = arith.cmpi ne, %3, %c0_i32_0 : i32
    scf.if %4 {
      %c0 = arith.constant 0 : index
      %c0_7 = arith.constant 0 : index
      %20 = vector.load %arg2[%c0, %c0_7] : memref<8x64xbf16, #tpu.memory_space<vmem>>, vector<8x64xbf16>
      %c0_8 = arith.constant 0 : index
      %c0_9 = arith.constant 0 : index
      %21 = vector.load %arg3[%c0_8, %c0_9] : memref<64x128xbf16, #tpu.memory_space<vmem>>, vector<64x128xbf16>
      %cst = arith.constant dense<0.000000e+00> : vector<8x128xf32>
      %22 = tpu.matmul %20, %21, %cst {dimension_numbers = #tpu.dot_dimension_numbers<[1], [0], [0], [1], [0, 0, 1, 1], [], []>} : vector<8x64xbf16>, vector<64x128xbf16>, vector<8x128xf32> -> vector<8x128xf32>
      %c0_10 = arith.constant 0 : index
      %c0_11 = arith.constant 0 : index
      %23 = vector.load %arg7[%c0_10, %c0_11] : memref<1x128xf32, #tpu.memory_space<vmem>>, vector<1x128xf32>
      %24 = vector.broadcast %23 : vector<1x128xf32> to vector<8x128xf32>
      %25 = arith.addf %22, %24 : vector<8x128xf32>
      %cst_12 = arith.constant 0.000000e+00 : f32
      %26 = vector.broadcast %cst_12 : f32 to vector<8x128xf32>
      %27 = arith.cmpf oge, %25, %26 : vector<8x128xf32>
      %cst_13 = arith.constant 2.000000e-01 : f32
      %28 = vector.broadcast %cst_13 : f32 to vector<8x128xf32>
      %29 = arith.mulf %28, %25 : vector<8x128xf32>
      %30 = arith.select %27, %25, %29 : vector<8x128xi1>, vector<8x128xf32>
      %31 = arith.truncf %30 : vector<8x128xf32> to vector<8x128xbf16>
      %c0_i32_14 = arith.constant 0 : i32
      %32 = arith.subi %arg1, %c0_i32_14 : i32
      %33 = arith.index_cast %32 : i32 to index
      %c0_15 = arith.constant 0 : index
      %c0_16 = arith.constant 0 : index
      %34 = vector.load %arg12[%33, %c0_15, %c0_16] : memref<2x8x128xbf16, #tpu.memory_space<vmem>>, vector<1x8x128xbf16>
      %35 = vector.shape_cast %34 : vector<1x8x128xbf16> to vector<8x128xbf16>
      %36 = vector.shape_cast %31 : vector<8x128xbf16> to vector<1x8x128xbf16>
      tpu.vector_store %arg12[%33, %c0_15, %c0_16], %36 {strides = array<i32>} : memref<2x8x128xbf16, #tpu.memory_space<vmem>>, vector<1x8x128xbf16>,
    } else {
    }
    %c2_i32_1 = arith.constant 2 : i32
    %5 = arith.cmpi sge, %arg1, %c2_i32_1 : i32
    %c4_i32 = arith.constant 4 : i32
    %6 = arith.cmpi slt, %arg1, %c4_i32 : i32
    %7 = arith.andi %5, %6 : i1
    %8 = arith.extui %7 : i1 to i32
    %c0_i32_2 = arith.constant 0 : i32
    %9 = arith.cmpi ne, %8, %c0_i32_2 : i32
    scf.if %9 {
      %cst = arith.constant 0.000000e+00 : f32
      %20 = vector.broadcast %cst : f32 to vector<8x128xf32>
      %c0 = arith.constant 0 : index
      %c0_7 = arith.constant 0 : index
      %21 = vector.load %arg4[%c0, %c0_7] : memref<256x128xbf16, #tpu.memory_space<vmem>>, vector<128x128xbf16>
      %c0_8 = arith.constant 0 : index
      %c0_9 = arith.constant 0 : index
      %c0_10 = arith.constant 0 : index
      %22 = vector.load %arg12[%c0_8, %c0_9, %c0_10] : memref<2x8x128xbf16, #tpu.memory_space<vmem>>, vector<1x8x128xbf16>
      %23 = vector.shape_cast %22 : vector<1x8x128xbf16> to vector<8x128xbf16>
      %cst_11 = arith.constant dense<0.000000e+00> : vector<8x128xf32>
      %24 = tpu.matmul %23, %21, %cst_11 {dimension_numbers = #tpu.dot_dimension_numbers<[1], [0], [0], [1], [0, 0, 1, 1], [], []>} : vector<8x128xbf16>, vector<128x128xbf16>, vector<8x128xf32> -> vector<8x128xf32>
      %25 = arith.addf %20, %24 : vector<8x128xf32>
      %c128 = arith.constant 128 : index
      %c0_12 = arith.constant 0 : index
      %26 = vector.load %arg4[%c128, %c0_12] : memref<256x128xbf16, #tpu.memory_space<vmem>>, vector<128x128xbf16>
      %c1 = arith.constant 1 : index
      %c0_13 = arith.constant 0 : index
      %c0_14 = arith.constant 0 : index
      %27 = vector.load %arg12[%c1, %c0_13, %c0_14] : memref<2x8x128xbf16, #tpu.memory_space<vmem>>, vector<1x8x128xbf16>
      %28 = vector.shape_cast %27 : vector<1x8x128xbf16> to vector<8x128xbf16>
      %cst_15 = arith.constant dense<0.000000e+00> : vector<8x128xf32>
      %29 = tpu.matmul %28, %26, %cst_15 {dimension_numbers = #tpu.dot_dimension_numbers<[1], [0], [0], [1], [0, 0, 1, 1], [], []>} : vector<8x128xbf16>, vector<128x128xbf16>, vector<8x128xf32> -> vector<8x128xf32>
      %30 = arith.addf %25, %29 : vector<8x128xf32>
      %c0_16 = arith.constant 0 : index
      %c0_17 = arith.constant 0 : index
      %31 = vector.load %arg8[%c0_16, %c0_17] : memref<1x128xf32, #tpu.memory_space<vmem>>, vector<1x128xf32>
      %32 = vector.broadcast %31 : vector<1x128xf32> to vector<8x128xf32>
      %33 = arith.addf %30, %32 : vector<8x128xf32>
      %cst_18 = arith.constant 0.000000e+00 : f32
      %34 = vector.broadcast %cst_18 : f32 to vector<8x128xf32>
      %35 = arith.cmpf oge, %33, %34 : vector<8x128xf32>
      %cst_19 = arith.constant 2.000000e-01 : f32
      %36 = vector.broadcast %cst_19 : f32 to vector<8x128xf32>
      %37 = arith.mulf %36, %33 : vector<8x128xf32>
      %38 = arith.select %35, %33, %37 : vector<8x128xi1>, vector<8x128xf32>
      %39 = arith.truncf %38 : vector<8x128xf32> to vector<8x128xbf16>
      %c2_i32_20 = arith.constant 2 : i32
      %40 = arith.subi %arg1, %c2_i32_20 : i32
      %41 = arith.index_cast %40 : i32 to index
      %c0_21 = arith.constant 0 : index
      %c0_22 = arith.constant 0 : index
      %42 = vector.load %arg13[%41, %c0_21, %c0_22] : memref<2x8x128xbf16, #tpu.memory_space<vmem>>, vector<1x8x128xbf16>
      %43 = vector.shape_cast %42 : vector<1x8x128xbf16> to vector<8x128xbf16>
      %44 = vector.shape_cast %39 : vector<8x128xbf16> to vector<1x8x128xbf16>
      tpu.vector_store %arg13[%41, %c0_21, %c0_22], %44 {strides = array<i32>} : memref<2x8x128xbf16, #tpu.memory_space<vmem>>, vector<1x8x128xbf16>,
    } else {
    }
    %c4_i32_3 = arith.constant 4 : i32
    %10 = arith.cmpi sge, %arg1, %c4_i32_3 : i32
    %c6_i32 = arith.constant 6 : i32
    %11 = arith.cmpi slt, %arg1, %c6_i32 : i32
    %12 = arith.andi %10, %11 : i1
    %13 = arith.extui %12 : i1 to i32
    %c0_i32_4 = arith.constant 0 : i32
    %14 = arith.cmpi ne, %13, %c0_i32_4 : i32
    scf.if %14 {
      %cst = arith.constant 0.000000e+00 : f32
      %20 = vector.broadcast %cst : f32 to vector<8x128xf32>
      %c0 = arith.constant 0 : index
      %c0_7 = arith.constant 0 : index
      %21 = vector.load %arg5[%c0, %c0_7] : memref<256x128xbf16, #tpu.memory_space<vmem>>, vector<128x128xbf16>
      %c0_8 = arith.constant 0 : index
      %c0_9 = arith.constant 0 : index
      %c0_10 = arith.constant 0 : index
      %22 = vector.load %arg13[%c0_8, %c0_9, %c0_10] : memref<2x8x128xbf16, #tpu.memory_space<vmem>>, vector<1x8x128xbf16>
      %23 = vector.shape_cast %22 : vector<1x8x128xbf16> to vector<8x128xbf16>
      %cst_11 = arith.constant dense<0.000000e+00> : vector<8x128xf32>
      %24 = tpu.matmul %23, %21, %cst_11 {dimension_numbers = #tpu.dot_dimension_numbers<[1], [0], [0], [1], [0, 0, 1, 1], [], []>} : vector<8x128xbf16>, vector<128x128xbf16>, vector<8x128xf32> -> vector<8x128xf32>
      %25 = arith.addf %20, %24 : vector<8x128xf32>
      %c128 = arith.constant 128 : index
      %c0_12 = arith.constant 0 : index
      %26 = vector.load %arg5[%c128, %c0_12] : memref<256x128xbf16, #tpu.memory_space<vmem>>, vector<128x128xbf16>
      %c1 = arith.constant 1 : index
      %c0_13 = arith.constant 0 : index
      %c0_14 = arith.constant 0 : index
      %27 = vector.load %arg13[%c1, %c0_13, %c0_14] : memref<2x8x128xbf16, #tpu.memory_space<vmem>>, vector<1x8x128xbf16>
      %28 = vector.shape_cast %27 : vector<1x8x128xbf16> to vector<8x128xbf16>
      %cst_15 = arith.constant dense<0.000000e+00> : vector<8x128xf32>
      %29 = tpu.matmul %28, %26, %cst_15 {dimension_numbers = #tpu.dot_dimension_numbers<[1], [0], [0], [1], [0, 0, 1, 1], [], []>} : vector<8x128xbf16>, vector<128x128xbf16>, vector<8x128xf32> -> vector<8x128xf32>
      %30 = arith.addf %25, %29 : vector<8x128xf32>
      %c0_16 = arith.constant 0 : index
      %c0_17 = arith.constant 0 : index
      %31 = vector.load %arg9[%c0_16, %c0_17] : memref<1x128xf32, #tpu.memory_space<vmem>>, vector<1x128xf32>
      %32 = vector.broadcast %31 : vector<1x128xf32> to vector<8x128xf32>
      %33 = arith.addf %30, %32 : vector<8x128xf32>
      %cst_18 = arith.constant 0.000000e+00 : f32
      %34 = vector.broadcast %cst_18 : f32 to vector<8x128xf32>
      %35 = arith.cmpf oge, %33, %34 : vector<8x128xf32>
      %cst_19 = arith.constant 2.000000e-01 : f32
      %36 = vector.broadcast %cst_19 : f32 to vector<8x128xf32>
      %37 = arith.mulf %36, %33 : vector<8x128xf32>
      %38 = arith.select %35, %33, %37 : vector<8x128xi1>, vector<8x128xf32>
      %39 = arith.truncf %38 : vector<8x128xf32> to vector<8x128xbf16>
      %c4_i32_20 = arith.constant 4 : i32
      %40 = arith.subi %arg1, %c4_i32_20 : i32
      %41 = arith.index_cast %40 : i32 to index
      %c0_21 = arith.constant 0 : index
      %c0_22 = arith.constant 0 : index
      %42 = vector.load %arg12[%41, %c0_21, %c0_22] : memref<2x8x128xbf16, #tpu.memory_space<vmem>>, vector<1x8x128xbf16>
      %43 = vector.shape_cast %42 : vector<1x8x128xbf16> to vector<8x128xbf16>
      %44 = vector.shape_cast %39 : vector<8x128xbf16> to vector<1x8x128xbf16>
      tpu.vector_store %arg12[%41, %c0_21, %c0_22], %44 {strides = array<i32>} : memref<2x8x128xbf16, #tpu.memory_space<vmem>>, vector<1x8x128xbf16>,
    } else {
    }
    %c6_i32_5 = arith.constant 6 : i32
    %15 = arith.cmpi sge, %arg1, %c6_i32_5 : i32
    %c7_i32 = arith.constant 7 : i32
    %16 = arith.cmpi slt, %arg1, %c7_i32 : i32
    %17 = arith.andi %15, %16 : i1
    %18 = arith.extui %17 : i1 to i32
    %c0_i32_6 = arith.constant 0 : i32
    %19 = arith.cmpi ne, %18, %c0_i32_6 : i32
    scf.if %19 {
      %cst = arith.constant 0.000000e+00 : f32
      %20 = vector.broadcast %cst : f32 to vector<8x128xf32>
      %c0 = arith.constant 0 : index
      %c0_7 = arith.constant 0 : index
      %21 = vector.load %arg6[%c0, %c0_7] : memref<256x128xbf16, #tpu.memory_space<vmem>>, vector<128x128xbf16>
      %c0_8 = arith.constant 0 : index
      %c0_9 = arith.constant 0 : index
      %c0_10 = arith.constant 0 : index
      %22 = vector.load %arg12[%c0_8, %c0_9, %c0_10] : memref<2x8x128xbf16, #tpu.memory_space<vmem>>, vector<1x8x128xbf16>
      %23 = vector.shape_cast %22 : vector<1x8x128xbf16> to vector<8x128xbf16>
      %cst_11 = arith.constant dense<0.000000e+00> : vector<8x128xf32>
      %24 = tpu.matmul %23, %21, %cst_11 {dimension_numbers = #tpu.dot_dimension_numbers<[1], [0], [0], [1], [0, 0, 1, 1], [], []>} : vector<8x128xbf16>, vector<128x128xbf16>, vector<8x128xf32> -> vector<8x128xf32>
      %25 = arith.addf %20, %24 : vector<8x128xf32>
      %c128 = arith.constant 128 : index
      %c0_12 = arith.constant 0 : index
      %26 = vector.load %arg6[%c128, %c0_12] : memref<256x128xbf16, #tpu.memory_space<vmem>>, vector<128x128xbf16>
      %c1 = arith.constant 1 : index
      %c0_13 = arith.constant 0 : index
      %c0_14 = arith.constant 0 : index
      %27 = vector.load %arg12[%c1, %c0_13, %c0_14] : memref<2x8x128xbf16, #tpu.memory_space<vmem>>, vector<1x8x128xbf16>
      %28 = vector.shape_cast %27 : vector<1x8x128xbf16> to vector<8x128xbf16>
      %cst_15 = arith.constant dense<0.000000e+00> : vector<8x128xf32>
      %29 = tpu.matmul %28, %26, %cst_15 {dimension_numbers = #tpu.dot_dimension_numbers<[1], [0], [0], [1], [0, 0, 1, 1], [], []>} : vector<8x128xbf16>, vector<128x128xbf16>, vector<8x128xf32> -> vector<8x128xf32>
      %30 = arith.addf %25, %29 : vector<8x128xf32>
      %c0_16 = arith.constant 0 : index
      %c0_17 = arith.constant 0 : index
      %31 = vector.load %arg10[%c0_16, %c0_17] : memref<1x128xf32, #tpu.memory_space<vmem>>, vector<1x128xf32>
      %32 = vector.broadcast %31 : vector<1x128xf32> to vector<8x128xf32>
      %33 = arith.addf %30, %32 : vector<8x128xf32>
      %c0_18 = arith.constant 0 : index
      %c0_19 = arith.constant 0 : index
      %34 = vector.load %arg11[%c0_18, %c0_19] : memref<8x128xf32, #tpu.memory_space<vmem>>, vector<8x128xf32>
      tpu.vector_store %arg11[%c0_18, %c0_19], %33 {strides = array<i32>} : memref<8x128xf32, #tpu.memory_space<vmem>>, vector<8x128xf32>,
    } else {
    }
    return
  }
  func.func @transform_0(%arg0: i32, %arg1: i32) -> (i32, i32) {
    %c0_i32 = arith.constant 0 : i32
    %c0_i32_0 = arith.constant 0 : i32
    return %arg0, %c0_i32 : i32, i32
  }
  func.func @transform_1(%arg0: i32, %arg1: i32) -> (i32, i32) {
    %c0_i32 = arith.constant 0 : i32
    %0 = arith.subi %arg1, %c0_i32 : i32
    %c0_i32_0 = arith.constant 0 : i32
    %1 = arith.maxsi %0, %c0_i32_0 : i32
    %c1_i32 = arith.constant 1 : i32
    %2 = arith.minsi %1, %c1_i32 : i32
    %c0_i32_1 = arith.constant 0 : i32
    %c0_i32_2 = arith.constant 0 : i32
    return %c0_i32_1, %2 : i32, i32
  }
  func.func @transform_2(%arg0: i32, %arg1: i32) -> (i32, i32) {
    %c2_i32 = arith.constant 2 : i32
    %0 = arith.subi %arg1, %c2_i32 : i32
    %c0_i32 = arith.constant 0 : i32
    %1 = arith.maxsi %0, %c0_i32 : i32
    %c1_i32 = arith.constant 1 : i32
    %2 = arith.minsi %1, %c1_i32 : i32
    %c0_i32_0 = arith.constant 0 : i32
    %c0_i32_1 = arith.constant 0 : i32
    return %c0_i32_0, %2 : i32, i32
  }
  func.func @transform_3(%arg0: i32, %arg1: i32) -> (i32, i32) {
    %c4_i32 = arith.constant 4 : i32
    %0 = arith.subi %arg1, %c4_i32 : i32
    %c0_i32 = arith.constant 0 : i32
    %1 = arith.maxsi %0, %c0_i32 : i32
    %c1_i32 = arith.constant 1 : i32
    %2 = arith.minsi %1, %c1_i32 : i32
    %c0_i32_0 = arith.constant 0 : i32
    %c0_i32_1 = arith.constant 0 : i32
    return %c0_i32_0, %2 : i32, i32
  }
  func.func @transform_4(%arg0: i32, %arg1: i32) -> (i32, i32) {
    %c6_i32 = arith.constant 6 : i32
    %0 = arith.subi %arg1, %c6_i32 : i32
    %c0_i32 = arith.constant 0 : i32
    %1 = arith.maxsi %0, %c0_i32 : i32
    %c0_i32_0 = arith.constant 0 : i32
    %2 = arith.minsi %1, %c0_i32_0 : i32
    %c0_i32_1 = arith.constant 0 : i32
    %c0_i32_2 = arith.constant 0 : i32
    return %c0_i32_1, %2 : i32, i32
  }
  func.func @transform_5(%arg0: i32, %arg1: i32) -> (i32, i32) {
    %c0_i32 = arith.constant 0 : i32
    %0 = arith.subi %arg1, %c0_i32 : i32
    %c0_i32_0 = arith.constant 0 : i32
    %1 = arith.maxsi %0, %c0_i32_0 : i32
    %c1_i32 = arith.constant 1 : i32
    %2 = arith.minsi %1, %c1_i32 : i32
    %c0_i32_1 = arith.constant 0 : i32
    %c0_i32_2 = arith.constant 0 : i32
    return %c0_i32_1, %2 : i32, i32
  }
  func.func @transform_6(%arg0: i32, %arg1: i32) -> (i32, i32) {
    %c2_i32 = arith.constant 2 : i32
    %0 = arith.subi %arg1, %c2_i32 : i32
    %c0_i32 = arith.constant 0 : i32
    %1 = arith.maxsi %0, %c0_i32 : i32
    %c1_i32 = arith.constant 1 : i32
    %2 = arith.minsi %1, %c1_i32 : i32
    %c0_i32_0 = arith.constant 0 : i32
    %c0_i32_1 = arith.constant 0 : i32
    return %c0_i32_0, %2 : i32, i32
  }
  func.func @transform_7(%arg0: i32, %arg1: i32) -> (i32, i32) {
    %c4_i32 = arith.constant 4 : i32
    %0 = arith.subi %arg1, %c4_i32 : i32
    %c0_i32 = arith.constant 0 : i32
    %1 = arith.maxsi %0, %c0_i32 : i32
    %c1_i32 = arith.constant 1 : i32
    %2 = arith.minsi %1, %c1_i32 : i32
    %c0_i32_0 = arith.constant 0 : i32
    %c0_i32_1 = arith.constant 0 : i32
    return %c0_i32_0, %2 : i32, i32
  }
  func.func @transform_8(%arg0: i32, %arg1: i32) -> (i32, i32) {
    %c6_i32 = arith.constant 6 : i32
    %0 = arith.subi %arg1, %c6_i32 : i32
    %c0_i32 = arith.constant 0 : i32
    %1 = arith.maxsi %0, %c0_i32 : i32
    %c0_i32_0 = arith.constant 0 : i32
    %2 = arith.minsi %1, %c0_i32_0 : i32
    %c0_i32_1 = arith.constant 0 : i32
    %c0_i32_2 = arith.constant 0 : i32
    return %c0_i32_1, %2 : i32, i32
  }
  func.func @transform_9(%arg0: i32, %arg1: i32) -> (i32, i32) {
    %c6_i32 = arith.constant 6 : i32
    %0 = arith.subi %arg1, %c6_i32 : i32
    %c0_i32 = arith.constant 0 : i32
    %1 = arith.maxsi %0, %c0_i32 : i32
    %c0_i32_0 = arith.constant 0 : i32
    %2 = arith.minsi %1, %c0_i32_0 : i32
    %c0_i32_1 = arith.constant 0 : i32
    return %arg0, %2 : i32, i32
  }
}

</mosaic_0001>

<llo_original>
// kernel: tpu_custom_call.1
$region0: #{tpu_custom_call.1}
  #allocation0 [shape = 'u32[]', space=smem, size = 0x4, offset = 0x4, fixed_abs, tag = 'smem constant byte address 0x4 - core index']
  #allocation1 [shape = 'u32[72,128]{1,0:T(1,128)}', space=vmem, size = 0x9000, scoped, tag = 'internal scratch']
  #allocation2 [shape = 'bf16[2,8,128]{2,1,0:T(8,128)(2,1)}', space=vmem, size = 0x1000, scoped, tag = 'scratch operand']
  #allocation3 [shape = 'bf16[2,8,128]{2,1,0:T(8,128)(2,1)}', space=vmem, size = 0x1000, scoped, tag = 'scratch operand']
  %s0 = inlined_call_operand.hbm [shape: bf16[8,64], index: 0, kind: input, shape index: {}]
  %s1 = inlined_call_operand.hbm [shape: bf16[64,256], index: 1, kind: input, shape index: {}]
  %s2 = inlined_call_operand.hbm [shape: bf16[256,256], index: 2, kind: input, shape index: {}]
  %s3 = inlined_call_operand.hbm [shape: bf16[256,256], index: 3, kind: input, shape index: {}]
  %s4 = inlined_call_operand.hbm [shape: bf16[256,128], index: 4, kind: input, shape index: {}]
  %s5 = inlined_call_operand.vmem [shape: f32[1,256], index: 5, kind: input, shape index: {}]
  %s6 = inlined_call_operand.vmem [shape: f32[1,256], index: 6, kind: input, shape index: {}]
  %s7 = inlined_call_operand.vmem [shape: f32[1,256], index: 7, kind: input, shape index: {}]
  %s8 = inlined_call_operand.vmem [shape: f32[1,128], index: 8, kind: input, shape index: {}]
  %s9 = inlined_call_operand.hbm [shape: f32[8,128], index: 9, kind: output, shape index: {}]
  %s10 = sld [smem:[#allocation0]]
  $region105: #{tpu_custom_call.1} parent=0
    _
  %s12 = ssub.s32 1, %s10
  %s13 = scalar_select 0, %s12, %s10
  $region1: #{tpu_custom_call.1} parent=0
    #allocation4 [shape = 'u8[2048]{0}', space=vmem, size = 0x800, scoped, tag = 'input window, operand 0, single buffered']
    #allocation5 [shape = 's32[2]{0}', space=sflag, size = 0x8, scoped, tag = 'scoped memory for tpu_custom_call.1']
    #allocation6 [shape = 's32[2]{0}', space=sflag, size = 0x8, scoped, tag = 'scoped memory for tpu_custom_call.1']
    #allocation7 [shape = 'u8[32768]{0}', space=vmem, size = 0x8000, scoped, tag = 'input window, operand 1']
    #allocation8 [shape = 's32[2]{0}', space=sflag, size = 0x8, scoped, tag = 'scoped memory for tpu_custom_call.1']
    #allocation9 [shape = 'u8[131072]{0}', space=vmem, size = 0x20000, scoped, tag = 'input window, operand 2']
    #allocation10 [shape = 'u8[131072]{0}', space=vmem, size = 0x20000, scoped, tag = 'input window, operand 3']
    #allocation11 [shape = 's32[2]{0}', space=sflag, size = 0x8, scoped, tag = 'scoped memory for tpu_custom_call.1']
    #allocation12 [shape = 'u8[131072]{0}', space=vmem, size = 0x20000, scoped, tag = 'input window, operand 4']
    #allocation13 [shape = 'u8[8192]{0}', space=vmem, size = 0x2000, scoped, tag = 'output window, operand 0']
    %14 = vsyncpa [#allocation5], 0
    %15 = vsyncpa [#allocation8], 0
    %s16 = scalar_lea.sflag [#allocation8], 1
    %17 = vsyncpa %s16, 0
    %18 = vsyncpa [#allocation11], 0
    %s19 = scalar_lea.sflag [#allocation11], 1
    %20 = vsyncpa %s19, 0
    %21 = vsyncpa [#allocation6], 0
    %s22 = scalar_lea.sflag [#allocation6], 1
    %23 = vsyncpa %s22, 0
    loop: start=0, step=1, limit=9
    $region2: #{tpu_custom_call.1} parent=1 // loop_pre_header
      _
    $region3: #{tpu_custom_call.1} parent=1 // loop_header
      %s25 = sphi 0, %s29
      %p26 = scmp.ge.s32.totalorder %s25, 9
      %s32 = sphi 0, %s44
      %s33 = sphi 0, %s40
      %s34 = sphi 0, %s32
      %s35 = sphi 0, %s33
      %s36 = sphi 0, %s34
      %s37 = sphi 0, %s35
      %s47 = sphi 0, %s49
      %s50 = sphi 0, %s47
      %s51 = sphi 0, %s50
      %s67 = sphi 0, %s51
      %s81 = sphi 0, %s83
      %s84 = sphi 0, %s81
      %s85 = sphi 0, %s84
      %s101 = sphi 0, %s85
      %s117 = sphi 0, %s119
      %s120 = sphi 0, %s117
      %s121 = sphi 0, %s120
      %s137 = sphi 0, %s121
      %s153 = sphi 0, %s155
      %s156 = sphi 0, %s153
      %s157 = sphi 0, %s156
      %s173 = sphi 0, %s157
      %s189 = sphi 0, %s191
      %s192 = sphi 0, %s189
      %s193 = sphi 0, %s192
      %s209 = sphi 0, %s193
      %s223 = sphi 0, %s225
      %s226 = sphi 0, %s223
      %s227 = sphi 0, %s226
      %s243 = sphi 0, %s227
      %s259 = sphi 0, %s261
      %s262 = sphi 0, %s259
      %s263 = sphi 0, %s262
      %s279 = sphi 0, %s263
      %s295 = sphi 0, %s297
      %s298 = sphi 0, %s295
      %s299 = sphi 0, %s298
      %s315 = sphi 0, %s299
      %s331 = sphi 0, %s333
      %s334 = sphi 0, %s331
      %s335 = sphi 0, %s334
      %s351 = sphi 0, %s335
      %s369 = sphi 0, %s371
      %s372 = sphi 0, %s369
      %s373 = sphi 0, %s372
      %s389 = sphi 0, %s373
    $region4: #{tpu_custom_call.1} parent=1 // loop_header_branch
      %28 = sbr.rel (%p26) target = $region8
    $region5: #{tpu_custom_call.1} parent=1 // loop_body
      %s30 = ssub.s32 %s25, 1
      %s31 = ssub.s32 %s25, 2
      %s38 = sadd.s32 1, %s33
      %p39 = scmp.ge.s32.totalorder %s38, 7
      %s40 = scalar_select %p39, 0, %s38
      %s41 = sadd.s32 1, %s32
      %s42 = scalar_select %p39, %s41, %s32
      %p43 = scmp.ge.s32.totalorder %s42, 1
      %s44 = scalar_select %p43, 0, %s42
      %s45 = ssub.s32 %s32, %s44
      %p46 = scmp.eq.s32.totalorder %s45, 0
      %s48 = sadd.s32 %s47, 1
      %s49 = scalar_select %p46, %s47, %s48
      %p52 = pneg %p46
      %p53 = scmp.eq.s32.totalorder %s25, 6
      %p54 = por %p52, %p53
      %p55 = scmp.ne.s32.totalorder %s47, %s50
      %p56 = scmp.eq.s32.totalorder %s25, 0
      %p57 = por %p55, %p56
      %p58 = scmp.ne.s32.totalorder %s47, %s50
      %p59 = scmp.eq.s32.totalorder %s30, 6
      %p60 = por %p58, %p59
      %p61 = scmp.ne.s32.totalorder %s50, %s51
      %p62 = scmp.eq.s32.totalorder %s30, 0
      %p63 = por %p61, %p62
      %p64 = scmp.ne.s32.totalorder %s50, %s51
      %p65 = scmp.eq.s32.totalorder %s31, 6
      %p66 = por %p64, %p65
      %p68 = scmp.ne.s32.totalorder %s51, %s67
      %p69 = scmp.eq.s32.totalorder %s31, 0
      %p70 = por %p68, %p69
      %p71 = scmp.gt.s32.totalorder %s33, 0
      %s72 = scalar_select %p71, %s33, 0
      %p73 = scmp.lt.s32.totalorder %s72, 1
      %s74 = scalar_select %p73, %s72, 1
      %p75 = scmp.gt.s32.totalorder %s40, 0
      %s76 = scalar_select %p75, %s40, 0
      %p77 = scmp.lt.s32.totalorder %s76, 1
      %s78 = scalar_select %p77, %s76, 1
      %s79 = ssub.s32 %s74, %s78
      %p80 = scmp.eq.s32.totalorder %s79, 0
      %s82 = sadd.s32 %s81, 1
      %s83 = scalar_select %p80, %s81, %s82
      %p86 = pneg %p80
      %p87 = scmp.eq.s32.totalorder %s25, 6
      %p88 = por %p86, %p87
      %p89 = scmp.ne.s32.totalorder %s81, %s84
      %p90 = scmp.eq.s32.totalorder %s25, 0
      %p91 = por %p89, %p90
      %p92 = scmp.ne.s32.totalorder %s81, %s84
      %p93 = scmp.eq.s32.totalorder %s30, 6
      %p94 = por %p92, %p93
      %p95 = scmp.ne.s32.totalorder %s84, %s85
      %p96 = scmp.eq.s32.totalorder %s30, 0
      %p97 = por %p95, %p96
      %p98 = scmp.ne.s32.totalorder %s84, %s85
      %p99 = scmp.eq.s32.totalorder %s31, 6
      %p100 = por %p98, %p99
      %p102 = scmp.ne.s32.totalorder %s85, %s101
      %p103 = scmp.eq.s32.totalorder %s31, 0
      %p104 = por %p102, %p103
      %s105 = ssub.s32 %s33, 2
      %p106 = scmp.gt.s32.totalorder %s105, 0
      %s107 = scalar_select %p106, %s105, 0
      %p108 = scmp.lt.s32.totalorder %s107, 1
      %s109 = scalar_select %p108, %s107, 1
      %s110 = ssub.s32 %s40, 2
      %p111 = scmp.gt.s32.totalorder %s110, 0
      %s112 = scalar_select %p111, %s110, 0
      %p113 = scmp.lt.s32.totalorder %s112, 1
      %s114 = scalar_select %p113, %s112, 1
      %s115 = ssub.s32 %s109, %s114
      %p116 = scmp.eq.s32.totalorder %s115, 0
      %s118 = sadd.s32 %s117, 1
      %s119 = scalar_select %p116, %s117, %s118
      %p122 = pneg %p116
      %p123 = scmp.eq.s32.totalorder %s25, 6
      %p124 = por %p122, %p123
      %p125 = scmp.ne.s32.totalorder %s117, %s120
      %p126 = scmp.eq.s32.totalorder %s25, 0
      %p127 = por %p125, %p126
      %p128 = scmp.ne.s32.totalorder %s117, %s120
      %p129 = scmp.eq.s32.totalorder %s30, 6
      %p130 = por %p128, %p129
      %p131 = scmp.ne.s32.totalorder %s120, %s121
      %p132 = scmp.eq.s32.totalorder %s30, 0
      %p133 = por %p131, %p132
      %p134 = scmp.ne.s32.totalorder %s120, %s121
      %p135 = scmp.eq.s32.totalorder %s31, 6
      %p136 = por %p134, %p135
      %p138 = scmp.ne.s32.totalorder %s121, %s137
      %p139 = scmp.eq.s32.totalorder %s31, 0
      %p140 = por %p138, %p139
      %s141 = ssub.s32 %s33, 4
      %p142 = scmp.gt.s32.totalorder %s141, 0
      %s143 = scalar_select %p142, %s141, 0
      %p144 = scmp.lt.s32.totalorder %s143, 1
      %s145 = scalar_select %p144, %s143, 1
      %s146 = ssub.s32 %s40, 4
      %p147 = scmp.gt.s32.totalorder %s146, 0
      %s148 = scalar_select %p147, %s146, 0
      %p149 = scmp.lt.s32.totalorder %s148, 1
      %s150 = scalar_select %p149, %s148, 1
      %s151 = ssub.s32 %s145, %s150
      %p152 = scmp.eq.s32.totalorder %s151, 0
      %s154 = sadd.s32 %s153, 1
      %s155 = scalar_select %p152, %s153, %s154
      %p158 = pneg %p152
      %p159 = scmp.eq.s32.totalorder %s25, 6
      %p160 = por %p158, %p159
      %p161 = scmp.ne.s32.totalorder %s153, %s156
      %p162 = scmp.eq.s32.totalorder %s25, 0
      %p163 = por %p161, %p162
      %p164 = scmp.ne.s32.totalorder %s153, %s156
      %p165 = scmp.eq.s32.totalorder %s30, 6
      %p166 = por %p164, %p165
      %p167 = scmp.ne.s32.totalorder %s156, %s157
      %p168 = scmp.eq.s32.totalorder %s30, 0
      %p169 = por %p167, %p168
      %p170 = scmp.ne.s32.totalorder %s156, %s157
      %p171 = scmp.eq.s32.totalorder %s31, 6
      %p172 = por %p170, %p171
      %p174 = scmp.ne.s32.totalorder %s157, %s173
      %p175 = scmp.eq.s32.totalorder %s31, 0
      %p176 = por %p174, %p175
      %s177 = ssub.s32 %s33, 6
      %p178 = scmp.gt.s32.totalorder %s177, 0
      %s179 = scalar_select %p178, %s177, 0
      %p180 = scmp.lt.s32.totalorder %s179, 0
      %s181 = scalar_select %p180, %s179, 0
      %s182 = ssub.s32 %s40, 6
      %p183 = scmp.gt.s32.totalorder %s182, 0
      %s184 = scalar_select %p183, %s182, 0
      %p185 = scmp.lt.s32.totalorder %s184, 0
      %s186 = scalar_select %p185, %s184, 0
      %s187 = ssub.s32 %s181, %s186
      %p188 = scmp.eq.s32.totalorder %s187, 0
      %s190 = sadd.s32 %s189, 1
      %s191 = scalar_select %p188, %s189, %s190
      %p194 = pneg %p188
      %p195 = scmp.eq.s32.totalorder %s25, 6
      %p196 = por %p194, %p195
      %p197 = scmp.ne.s32.totalorder %s189, %s192
      %p198 = scmp.eq.s32.totalorder %s25, 0
      %p199 = por %p197, %p198
      %p200 = scmp.ne.s32.totalorder %s189, %s192
      %p201 = scmp.eq.s32.totalorder %s30, 6
      %p202 = por %p200, %p201
      %p203 = scmp.ne.s32.totalorder %s192, %s193
      %p204 = scmp.eq.s32.totalorder %s30, 0
      %p205 = por %p203, %p204
      %p206 = scmp.ne.s32.totalorder %s192, %s193
      %p207 = scmp.eq.s32.totalorder %s31, 6
      %p208 = por %p206, %p207
      %p210 = scmp.ne.s32.totalorder %s193, %s209
      %p211 = scmp.eq.s32.totalorder %s31, 0
      %p212 = por %p210, %p211
      %p213 = scmp.gt.s32.totalorder %s33, 0
      %s214 = scalar_select %p213, %s33, 0
      %p215 = scmp.lt.s32.totalorder %s214, 1
      %s216 = scalar_select %p215, %s214, 1
      %p217 = scmp.gt.s32.totalorder %s40, 0
      %s218 = scalar_select %p217, %s40, 0
      %p219 = scmp.lt.s32.totalorder %s218, 1
      %s220 = scalar_select %p219, %s218, 1
      %s221 = ssub.s32 %s216, %s220
      %p222 = scmp.eq.s32.totalorder %s221, 0
      %s224 = sadd.s32 %s223, 1
      %s225 = scalar_select %p222, %s223, %s224
      %p228 = pneg %p222
      %p229 = scmp.eq.s32.totalorder %s25, 6
      %p230 = por %p228, %p229
      %p231 = scmp.ne.s32.totalorder %s223, %s226
      %p232 = scmp.eq.s32.totalorder %s25, 0
      %p233 = por %p231, %p232
      %p234 = scmp.ne.s32.totalorder %s223, %s226
      %p235 = scmp.eq.s32.totalorder %s30, 6
      %p236 = por %p234, %p235
      %p237 = scmp.ne.s32.totalorder %s226, %s227
      %p238 = scmp.eq.s32.totalorder %s30, 0
      %p239 = por %p237, %p238
      %p240 = scmp.ne.s32.totalorder %s226, %s227
      %p241 = scmp.eq.s32.totalorder %s31, 6
      %p242 = por %p240, %p241
      %p244 = scmp.ne.s32.totalorder %s227, %s243
      %p245 = scmp.eq.s32.totalorder %s31, 0
      %p246 = por %p244, %p245
      %s247 = ssub.s32 %s33, 2
      %p248 = scmp.gt.s32.totalorder %s247, 0
      %s249 = scalar_select %p248, %s247, 0
      %p250 = scmp.lt.s32.totalorder %s249, 1
      %s251 = scalar_select %p250, %s249, 1
      %s252 = ssub.s32 %s40, 2
      %p253 = scmp.gt.s32.totalorder %s252, 0
      %s254 = scalar_select %p253, %s252, 0
      %p255 = scmp.lt.s32.totalorder %s254, 1
      %s256 = scalar_select %p255, %s254, 1
      %s257 = ssub.s32 %s251, %s256
      %p258 = scmp.eq.s32.totalorder %s257, 0
      %s260 = sadd.s32 %s259, 1
      %s261 = scalar_select %p258, %s259, %s260
      %p264 = pneg %p258
      %p265 = scmp.eq.s32.totalorder %s25, 6
      %p266 = por %p264, %p265
      %p267 = scmp.ne.s32.totalorder %s259, %s262
      %p268 = scmp.eq.s32.totalorder %s25, 0
      %p269 = por %p267, %p268
      %p270 = scmp.ne.s32.totalorder %s259, %s262
      %p271 = scmp.eq.s32.totalorder %s30, 6
      %p272 = por %p270, %p271
      %p273 = scmp.ne.s32.totalorder %s262, %s263
      %p274 = scmp.eq.s32.totalorder %s30, 0
      %p275 = por %p273, %p274
      %p276 = scmp.ne.s32.totalorder %s262, %s263
      %p277 = scmp.eq.s32.totalorder %s31, 6
      %p278 = por %p276, %p277
      %p280 = scmp.ne.s32.totalorder %s263, %s279
      %p281 = scmp.eq.s32.totalorder %s31, 0
      %p282 = por %p280, %p281
      %s283 = ssub.s32 %s33, 4
      %p284 = scmp.gt.s32.totalorder %s283, 0
      %s285 = scalar_select %p284, %s283, 0
      %p286 = scmp.lt.s32.totalorder %s285, 1
      %s287 = scalar_select %p286, %s285, 1
      %s288 = ssub.s32 %s40, 4
      %p289 = scmp.gt.s32.totalorder %s288, 0
      %s290 = scalar_select %p289, %s288, 0
      %p291 = scmp.lt.s32.totalorder %s290, 1
      %s292 = scalar_select %p291, %s290, 1
      %s293 = ssub.s32 %s287, %s292
      %p294 = scmp.eq.s32.totalorder %s293, 0
      %s296 = sadd.s32 %s295, 1
      %s297 = scalar_select %p294, %s295, %s296
      %p300 = pneg %p294
      %p301 = scmp.eq.s32.totalorder %s25, 6
      %p302 = por %p300, %p301
      %p303 = scmp.ne.s32.totalorder %s295, %s298
      %p304 = scmp.eq.s32.totalorder %s25, 0
      %p305 = por %p303, %p304
      %p306 = scmp.ne.s32.totalorder %s295, %s298
      %p307 = scmp.eq.s32.totalorder %s30, 6
      %p308 = por %p306, %p307
      %p309 = scmp.ne.s32.totalorder %s298, %s299
      %p310 = scmp.eq.s32.totalorder %s30, 0
      %p311 = por %p309, %p310
      %p312 = scmp.ne.s32.totalorder %s298, %s299
      %p313 = scmp.eq.s32.totalorder %s31, 6
      %p314 = por %p312, %p313
      %p316 = scmp.ne.s32.totalorder %s299, %s315
      %p317 = scmp.eq.s32.totalorder %s31, 0
      %p318 = por %p316, %p317
      %s319 = ssub.s32 %s33, 6
      %p320 = scmp.gt.s32.totalorder %s319, 0
      %s321 = scalar_select %p320, %s319, 0
      %p322 = scmp.lt.s32.totalorder %s321, 0
      %s323 = scalar_select %p322, %s321, 0
      %s324 = ssub.s32 %s40, 6
      %p325 = scmp.gt.s32.totalorder %s324, 0
      %s326 = scalar_select %p325, %s324, 0
      %p327 = scmp.lt.s32.totalorder %s326, 0
      %s328 = scalar_select %p327, %s326, 0
      %s329 = ssub.s32 %s323, %s328
      %p330 = scmp.eq.s32.totalorder %s329, 0
      %s332 = sadd.s32 %s331, 1
      %s333 = scalar_select %p330, %s331, %s332
      %p336 = pneg %p330
      %p337 = scmp.eq.s32.totalorder %s25, 6
      %p338 = por %p336, %p337
      %p339 = scmp.ne.s32.totalorder %s331, %s334
      %p340 = scmp.eq.s32.totalorder %s25, 0
      %p341 = por %p339, %p340
      %p342 = scmp.ne.s32.totalorder %s331, %s334
      %p343 = scmp.eq.s32.totalorder %s30, 6
      %p344 = por %p342, %p343
      %p345 = scmp.ne.s32.totalorder %s334, %s335
      %p346 = scmp.eq.s32.totalorder %s30, 0
      %p347 = por %p345, %p346
      %p348 = scmp.ne.s32.totalorder %s334, %s335
      %p349 = scmp.eq.s32.totalorder %s31, 6
      %p350 = por %p348, %p349
      %p352 = scmp.ne.s32.totalorder %s335, %s351
      %p353 = scmp.eq.s32.totalorder %s31, 0
      %p354 = por %p352, %p353
      %s355 = ssub.s32 %s33, 6
      %p356 = scmp.gt.s32.totalorder %s355, 0
      %s357 = scalar_select %p356, %s355, 0
      %p358 = scmp.lt.s32.totalorder %s357, 0
      %s359 = scalar_select %p358, %s357, 0
      %s360 = ssub.s32 %s40, 6
      %p361 = scmp.gt.s32.totalorder %s360, 0
      %s362 = scalar_select %p361, %s360, 0
      %p363 = scmp.lt.s32.totalorder %s362, 0
      %s364 = scalar_select %p363, %s362, 0
      %s365 = ssub.s32 %s32, %s44
      %s366 = ssub.s32 %s359, %s364
      %s367 = sor.u32 %s365, %s366
      %p368 = scmp.eq.s32.totalorder %s367, 0
      %s370 = sadd.s32 %s369, 1
      %s371 = scalar_select %p368, %s369, %s370
      %p374 = pneg %p368
      %p375 = scmp.eq.s32.totalorder %s25, 6
      %p376 = por %p374, %p375
      %p377 = scmp.ne.s32.totalorder %s369, %s372
      %p378 = scmp.eq.s32.totalorder %s25, 0
      %p379 = por %p377, %p378
      %p380 = scmp.ne.s32.totalorder %s369, %s372
      %p381 = scmp.eq.s32.totalorder %s30, 6
      %p382 = por %p380, %p381
      %p383 = scmp.ne.s32.totalorder %s372, %s373
      %p384 = scmp.eq.s32.totalorder %s30, 0
      %p385 = por %p383, %p384
      %p386 = scmp.ne.s32.totalorder %s372, %s373
      %p387 = scmp.eq.s32.totalorder %s31, 6
      %p388 = por %p386, %p387
      %p390 = scmp.ne.s32.totalorder %s373, %s389
      %p391 = scmp.eq.s32.totalorder %s31, 0
      %p392 = por %p390, %p391
      %p393 = scmp.le.s32.totalorder 1, %s25
      %p394 = scmp.lt.s32.totalorder %s25, 8
      %p395 = pnand %p393, %p394
      %p396 = pneg %p395
      // Predicated region
      $region9: #{tpu_custom_call.1} parent=5 // pred_check
        _
      $region10: #{tpu_custom_call.1} parent=5 // pred_check_branch
        %398 = sbr.rel (%p395) target = $region12
      $region11: #{tpu_custom_call.1} parent=5 // pred_region
        %s399 = ssub.s32 %s25, 1
        // Predicated region
        $region13: #{tpu_custom_call.1} parent=11 // pred_check
          %p400 = pneg %p63
        $region14: #{tpu_custom_call.1} parent=11 // pred_check_branch
          %402 = sbr.rel (%p400) target = $region16
        $region15: #{tpu_custom_call.1} parent=11 // pred_region
          %404 = vsyncadd [#allocation5], 0
          %s405 = smul.addr %s34, 4
          %s406 = scalar_lea.hbm %s0, %s405
          %s408 = sshll.u32 %s406, 4
          %s409 = int_to_ptr.hbm [resolvable:$true] %s408
          %s410 = sshll.u32 [#allocation4], 4
          %s411 = int_to_ptr.vmem [resolvable:$true] %s410
          %413 = dma.hbm_to_vmem [thread:$0]  %s409, 64, %s411, [#allocation5]
        $region16: #{tpu_custom_call.1} parent=11 // pred_fallthru
          _
      $region12: #{tpu_custom_call.1} parent=5 // pred_fallthru
        _
      %p414 = scmp.lt.s32.totalorder %s25, 7
      // Predicated region
      $region17: #{tpu_custom_call.1} parent=5 // pred_check
        %p415 = pneg %p414
      $region18: #{tpu_custom_call.1} parent=5 // pred_check_branch
        %417 = sbr.rel (%p415) target = $region20
      $region19: #{tpu_custom_call.1} parent=5 // pred_region
        // Predicated region
        $region21: #{tpu_custom_call.1} parent=19 // pred_check
          %p418 = pneg %p91
        $region22: #{tpu_custom_call.1} parent=19 // pred_check_branch
          %420 = sbr.rel (%p418) target = $region24
        $region23: #{tpu_custom_call.1} parent=19 // pred_region
          %s421 = sand.u32 %s25, 1
          %s422 = scalar_lea.sflag [#allocation8], %s421
          %s423 = sand.u32 %s81, 1
          %s424 = smul.addr %s423, 32
          %s425 = scalar_lea.vmem [#allocation7], %s424
          %p426 = scmp.gt.s32.totalorder %s33, 0
          %s427 = scalar_select %p426, %s33, 0
          %p428 = scmp.lt.s32.totalorder %s427, 1
          %s429 = scalar_select %p428, %s427, 1
          %431 = vsyncadd %s422, 0
          %s432 = smul.addr %s429, 4
          %s433 = scalar_lea.hbm %s1, %s432
          %s434 = sshll.u32 %s433, 4
          %s435 = int_to_ptr.hbm [resolvable:$true] %s434
          %s436 = sshll.u32 %s425, 4
          %s437 = int_to_ptr.vmem [resolvable:$true] %s436
          %442 = dma.hbm_to_vmem [thread:$0]  %s435, 512, %s437, %s422, 128, 64, 4
        $region24: #{tpu_custom_call.1} parent=19 // pred_fallthru
          _
        // Predicated region
        $region25: #{tpu_custom_call.1} parent=19 // pred_check
          %p443 = pneg %p127
        $region26: #{tpu_custom_call.1} parent=19 // pred_check_branch
          %445 = sbr.rel (%p443) target = $region28
        $region27: #{tpu_custom_call.1} parent=19 // pred_region
          %s446 = sand.u32 %s25, 1
          %s447 = scalar_lea.sflag [#allocation8], %s446
          %s448 = sand.u32 %s117, 1
          %s449 = smul.addr %s448, 128
          %s450 = scalar_lea.vmem [#allocation9], %s449
          %s451 = ssub.s32 %s33, 2
          %p452 = scmp.gt.s32.totalorder %s451, 0
          %s453 = scalar_select %p452, %s451, 0
          %p454 = scmp.lt.s32.totalorder %s453, 1
          %s455 = scalar_select %p454, %s453, 1
          %457 = vsyncadd %s447, 0
          %s458 = smul.addr %s455, 4
          %s459 = scalar_lea.hbm %s2, %s458
          %s460 = sshll.u32 %s459, 4
          %s461 = int_to_ptr.hbm [resolvable:$true] %s460
          %s462 = sshll.u32 %s450, 4
          %s463 = int_to_ptr.vmem [resolvable:$true] %s462
          %468 = dma.hbm_to_vmem [thread:$0]  %s461, 2048, %s463, %s447, 128, 64, 4
        $region28: #{tpu_custom_call.1} parent=19 // pred_fallthru
          _
        // Predicated region
        $region29: #{tpu_custom_call.1} parent=19 // pred_check
          %p469 = pneg %p163
        $region30: #{tpu_custom_call.1} parent=19 // pred_check_branch
          %471 = sbr.rel (%p469) target = $region32
        $region31: #{tpu_custom_call.1} parent=19 // pred_region
          %s472 = sand.u32 %s25, 1
          %s473 = scalar_lea.sflag [#allocation11], %s472
          %s474 = sand.u32 %s153, 1
          %s475 = smul.addr %s474, 128
          %s476 = scalar_lea.vmem [#allocation10], %s475
          %s477 = ssub.s32 %s33, 4
          %p478 = scmp.gt.s32.totalorder %s477, 0
          %s479 = scalar_select %p478, %s477, 0
          %p480 = scmp.lt.s32.totalorder %s479, 1
          %s481 = scalar_select %p480, %s479, 1
          %483 = vsyncadd %s473, 0
          %s484 = smul.addr %s481, 4
          %s485 = scalar_lea.hbm %s3, %s484
          %s486 = sshll.u32 %s485, 4
          %s487 = int_to_ptr.hbm [resolvable:$true] %s486
          %s488 = sshll.u32 %s476, 4
          %s489 = int_to_ptr.vmem [resolvable:$true] %s488
          %494 = dma.hbm_to_vmem [thread:$0]  %s487, 2048, %s489, %s473, 128, 64, 4
        $region32: #{tpu_custom_call.1} parent=19 // pred_fallthru
          _
        // Predicated region
        $region33: #{tpu_custom_call.1} parent=19 // pred_check
          %p495 = pneg %p199
        $region34: #{tpu_custom_call.1} parent=19 // pred_check_branch
          %497 = sbr.rel (%p495) target = $region36
        $region35: #{tpu_custom_call.1} parent=19 // pred_region
          %s498 = sand.u32 %s25, 1
          %s499 = scalar_lea.sflag [#allocation11], %s498
          %s500 = sand.u32 %s189, 1
          %s501 = smul.addr %s500, 128
          %s502 = scalar_lea.vmem [#allocation12], %s501
          %s503 = ssub.s32 %s33, 6
          %p504 = scmp.gt.s32.totalorder %s503, 0
          %s505 = scalar_select %p504, %s503, 0
          %p506 = scmp.lt.s32.totalorder %s505, 0
          %s507 = scalar_select %p506, %s505, 0
          %509 = vsyncadd %s499, 0
          %s510 = smul.addr %s507, 4
          %s511 = scalar_lea.hbm %s4, %s510
          %s512 = sshll.u32 %s511, 4
          %s513 = int_to_ptr.hbm [resolvable:$true] %s512
          %s514 = sshll.u32 %s502, 4
          %s515 = int_to_ptr.vmem [resolvable:$true] %s514
          %520 = dma.hbm_to_vmem [thread:$0]  %s513, 2048, %s515, %s499, 64, 64, 4
        $region36: #{tpu_custom_call.1} parent=19 // pred_fallthru
          _
        // Predicated region
        $region37: #{tpu_custom_call.1} parent=19 // pred_check
          %p521 = pneg %p233
        $region38: #{tpu_custom_call.1} parent=19 // pred_check_branch
          %523 = sbr.rel (%p521) target = $region40
        $region39: #{tpu_custom_call.1} parent=19 // pred_region
          %p524 = scmp.gt.s32.totalorder %s33, 0
          %s525 = scalar_select %p524, %s33, 0
          %p526 = scmp.lt.s32.totalorder %s525, 1
          %s527 = scalar_select %p526, %s525, 1
          %p528 = scmp.lt.s32.totalorder %s527, 1
          %s529 = scalar_select %p528, %s527, 1
          %s530 = scalar_lea.vmem %s5, %s529
          %p531 = scmp.gt.s32.totalorder %s33, 0
          %s532 = scalar_select %p531, %s33, 0
          %p533 = scmp.lt.s32.totalorder %s532, 1
          %s534 = scalar_select %p533, %s532, 1
        $region40: #{tpu_custom_call.1} parent=19 // pred_fallthru
          _
        // Predicated region
        $region41: #{tpu_custom_call.1} parent=19 // pred_check
          %p535 = pneg %p269
        $region42: #{tpu_custom_call.1} parent=19 // pred_check_branch
          %537 = sbr.rel (%p535) target = $region44
        $region43: #{tpu_custom_call.1} parent=19 // pred_region
          %s538 = ssub.s32 %s33, 2
          %p539 = scmp.gt.s32.totalorder %s538, 0
          %s540 = scalar_select %p539, %s538, 0
          %p541 = scmp.lt.s32.totalorder %s540, 1
          %s542 = scalar_select %p541, %s540, 1
          %p543 = scmp.lt.s32.totalorder %s542, 1
          %s544 = scalar_select %p543, %s542, 1
          %s545 = scalar_lea.vmem %s6, %s544
          %s546 = ssub.s32 %s33, 2
          %p547 = scmp.gt.s32.totalorder %s546, 0
          %s548 = scalar_select %p547, %s546, 0
          %p549 = scmp.lt.s32.totalorder %s548, 1
          %s550 = scalar_select %p549, %s548, 1
        $region44: #{tpu_custom_call.1} parent=19 // pred_fallthru
          _
        // Predicated region
        $region45: #{tpu_custom_call.1} parent=19 // pred_check
          %p551 = pneg %p305
        $region46: #{tpu_custom_call.1} parent=19 // pred_check_branch
          %553 = sbr.rel (%p551) target = $region48
        $region47: #{tpu_custom_call.1} parent=19 // pred_region
          %s554 = ssub.s32 %s33, 4
          %p555 = scmp.gt.s32.totalorder %s554, 0
          %s556 = scalar_select %p555, %s554, 0
          %p557 = scmp.lt.s32.totalorder %s556, 1
          %s558 = scalar_select %p557, %s556, 1
          %p559 = scmp.lt.s32.totalorder %s558, 1
          %s560 = scalar_select %p559, %s558, 1
          %s561 = scalar_lea.vmem %s7, %s560
          %s562 = ssub.s32 %s33, 4
          %p563 = scmp.gt.s32.totalorder %s562, 0
          %s564 = scalar_select %p563, %s562, 0
          %p565 = scmp.lt.s32.totalorder %s564, 1
          %s566 = scalar_select %p565, %s564, 1
        $region48: #{tpu_custom_call.1} parent=19 // pred_fallthru
          _
        // Predicated region
        $region49: #{tpu_custom_call.1} parent=19 // pred_check
          %p567 = pneg %p341
        $region50: #{tpu_custom_call.1} parent=19 // pred_check_branch
          %569 = sbr.rel (%p567) target = $region52
        $region51: #{tpu_custom_call.1} parent=19 // pred_region
          %s570 = ssub.s32 %s33, 6
          %p571 = scmp.gt.s32.totalorder %s570, 0
          %s572 = scalar_select %p571, %s570, 0
          %p573 = scmp.lt.s32.totalorder %s572, 0
          %s574 = scalar_select %p573, %s572, 0
          %p575 = scmp.lt.s32.totalorder %s574, 0
          %s576 = scalar_select %p575, %s574, 0
          %s577 = scalar_lea.vmem %s8, %s576
          %s578 = ssub.s32 %s33, 6
          %p579 = scmp.gt.s32.totalorder %s578, 0
          %s580 = scalar_select %p579, %s578, 0
          %p581 = scmp.lt.s32.totalorder %s580, 0
          %s582 = scalar_select %p581, %s580, 0
        $region52: #{tpu_custom_call.1} parent=19 // pred_fallthru
          _
      $region20: #{tpu_custom_call.1} parent=5 // pred_fallthru
        _
      %p583 = scmp.le.s32.totalorder 1, %s25
      %p584 = scmp.lt.s32.totalorder %s25, 8
      %p585 = pnand %p583, %p584
      %p586 = pneg %p585
      // Predicated region
      $region53: #{tpu_custom_call.1} parent=5 // pred_check
        _
      $region54: #{tpu_custom_call.1} parent=5 // pred_check_branch
        %588 = sbr.rel (%p585) target = $region56
      $region55: #{tpu_custom_call.1} parent=5 // pred_region
        %s589 = ssub.s32 %s25, 1
        // Predicated region
        $region57: #{tpu_custom_call.1} parent=55 // pred_check
          %p590 = pneg %p63
        $region58: #{tpu_custom_call.1} parent=55 // pred_check_branch
          %592 = sbr.rel (%p590) target = $region60
        $region59: #{tpu_custom_call.1} parent=55 // pred_region
          %594 = dma.done [#allocation5], 64
        $region60: #{tpu_custom_call.1} parent=55 // pred_fallthru
          _
        %s595 = sand.u32 %s30, 1
        %s596 = scalar_lea.sflag [#allocation8], %s595
        %s597 = sand.u32 %s84, 1
        %s598 = smul.addr %s597, 32
        %s599 = scalar_lea.vmem [#allocation7], %s598
        // Predicated region
        $region61: #{tpu_custom_call.1} parent=55 // pred_check
          %p600 = pneg %p97
        $region62: #{tpu_custom_call.1} parent=55 // pred_check_branch
          %602 = sbr.rel (%p600) target = $region64
        $region63: #{tpu_custom_call.1} parent=55 // pred_region
          %604 = dma.done %s596, 512
        $region64: #{tpu_custom_call.1} parent=55 // pred_fallthru
          _
        %s605 = sand.u32 %s30, 1
        %s606 = scalar_lea.sflag [#allocation8], %s605
        %s607 = sand.u32 %s120, 1
        %s608 = smul.addr %s607, 128
        %s609 = scalar_lea.vmem [#allocation9], %s608
        // Predicated region
        $region65: #{tpu_custom_call.1} parent=55 // pred_check
          %p610 = pneg %p133
        $region66: #{tpu_custom_call.1} parent=55 // pred_check_branch
          %612 = sbr.rel (%p610) target = $region68
        $region67: #{tpu_custom_call.1} parent=55 // pred_region
          %614 = dma.done %s606, 2048
        $region68: #{tpu_custom_call.1} parent=55 // pred_fallthru
          _
        %s615 = sand.u32 %s30, 1
        %s616 = scalar_lea.sflag [#allocation11], %s615
        %s617 = sand.u32 %s156, 1
        %s618 = smul.addr %s617, 128
        %s619 = scalar_lea.vmem [#allocation10], %s618
        // Predicated region
        $region69: #{tpu_custom_call.1} parent=55 // pred_check
          %p620 = pneg %p169
        $region70: #{tpu_custom_call.1} parent=55 // pred_check_branch
          %622 = sbr.rel (%p620) target = $region72
        $region71: #{tpu_custom_call.1} parent=55 // pred_region
          %624 = dma.done %s616, 2048
        $region72: #{tpu_custom_call.1} parent=55 // pred_fallthru
          _
        %s625 = sand.u32 %s30, 1
        %s626 = scalar_lea.sflag [#allocation11], %s625
        %s627 = sand.u32 %s192, 1
        %s628 = smul.addr %s627, 128
        %s629 = scalar_lea.vmem [#allocation12], %s628
        // Predicated region
        $region73: #{tpu_custom_call.1} parent=55 // pred_check
          %p630 = pneg %p205
        $region74: #{tpu_custom_call.1} parent=55 // pred_check_branch
          %632 = sbr.rel (%p630) target = $region76
        $region75: #{tpu_custom_call.1} parent=55 // pred_region
          %634 = dma.done %s626, 2048
        $region76: #{tpu_custom_call.1} parent=55 // pred_fallthru
          _
        %p635 = pneg %p63
        %p636 = pneg %p60
        %s637 = sand.u32 %s30, 1
        %s638 = scalar_lea.sflag [#allocation8], %s637
        %s639 = sand.u32 %s84, 1
        %s640 = smul.addr %s639, 32
        %s641 = scalar_lea.vmem [#allocation7], %s640
        %p642 = pneg %p97
        %p643 = pneg %p94
        %s644 = sand.u32 %s30, 1
        %s645 = scalar_lea.sflag [#allocation8], %s644
        %s646 = sand.u32 %s120, 1
        %s647 = smul.addr %s646, 128
        %s648 = scalar_lea.vmem [#allocation9], %s647
        %p649 = pneg %p133
        %p650 = pneg %p130
        %s651 = sand.u32 %s30, 1
        %s652 = scalar_lea.sflag [#allocation11], %s651
        %s653 = sand.u32 %s156, 1
        %s654 = smul.addr %s653, 128
        %s655 = scalar_lea.vmem [#allocation10], %s654
        %p656 = pneg %p169
        %p657 = pneg %p166
        %s658 = sand.u32 %s30, 1
        %s659 = scalar_lea.sflag [#allocation11], %s658
        %s660 = sand.u32 %s192, 1
        %s661 = smul.addr %s660, 128
        %s662 = scalar_lea.vmem [#allocation12], %s661
        %p663 = pneg %p205
        %p664 = pneg %p202
        %p665 = scmp.gt.s32.totalorder %s35, 0
        %s666 = scalar_select %p665, %s35, 0
        %p667 = scmp.lt.s32.totalorder %s666, 1
        %s668 = scalar_select %p667, %s666, 1
        %p669 = scmp.lt.s32.totalorder %s668, 1
        %s670 = scalar_select %p669, %s668, 1
        %s671 = scalar_lea.vmem %s5, %s670
        %p672 = pneg %p239
        %p673 = pneg %p236
        %s674 = ssub.s32 %s35, 2
        %p675 = scmp.gt.s32.totalorder %s674, 0
        %s676 = scalar_select %p675, %s674, 0
        %p677 = scmp.lt.s32.totalorder %s676, 1
        %s678 = scalar_select %p677, %s676, 1
        %p679 = scmp.lt.s32.totalorder %s678, 1
        %s680 = scalar_select %p679, %s678, 1
        %s681 = scalar_lea.vmem %s6, %s680
        %p682 = pneg %p275
        %p683 = pneg %p272
        %s684 = ssub.s32 %s35, 4
        %p685 = scmp.gt.s32.totalorder %s684, 0
        %s686 = scalar_select %p685, %s684, 0
        %p687 = scmp.lt.s32.totalorder %s686, 1
        %s688 = scalar_select %p687, %s686, 1
        %p689 = scmp.lt.s32.totalorder %s688, 1
        %s690 = scalar_select %p689, %s688, 1
        %s691 = scalar_lea.vmem %s7, %s690
        %p692 = pneg %p311
        %p693 = pneg %p308
        %s694 = ssub.s32 %s35, 6
        %p695 = scmp.gt.s32.totalorder %s694, 0
        %s696 = scalar_select %p695, %s694, 0
        %p697 = scmp.lt.s32.totalorder %s696, 0
        %s698 = scalar_select %p697, %s696, 0
        %p699 = scmp.lt.s32.totalorder %s698, 0
        %s700 = scalar_select %p699, %s698, 0
        %s701 = scalar_lea.vmem %s8, %s700
        %p702 = pneg %p347
        %p703 = pneg %p344
        %p704 = pneg %p385
        %p705 = pneg %p382
        %s706 = sand.u32 %s372, 1
        %s707 = scalar_lea.sflag [#allocation6], %s706
        %s708 = sand.u32 %s372, 1
        %s709 = smul.addr %s708, 8
        %s710 = scalar_lea.vmem [#allocation13], %s709
        %p711 = scmp.gt.s32.totalorder %s35, 0
        %s712 = scalar_select %p711, %s35, 0
        %p713 = scmp.lt.s32.totalorder %s712, 1
        %s714 = scalar_select %p713, %s712, 1
        %s715 = ssub.s32 %s35, 2
        %p716 = scmp.gt.s32.totalorder %s715, 0
        %s717 = scalar_select %p716, %s715, 0
        %p718 = scmp.lt.s32.totalorder %s717, 1
        %s719 = scalar_select %p718, %s717, 1
        %s720 = ssub.s32 %s35, 4
        %p721 = scmp.gt.s32.totalorder %s720, 0
        %s722 = scalar_select %p721, %s720, 0
        %p723 = scmp.lt.s32.totalorder %s722, 1
        %s724 = scalar_select %p723, %s722, 1
        %s725 = ssub.s32 %s35, 6
        %p726 = scmp.gt.s32.totalorder %s725, 0
        %s727 = scalar_select %p726, %s725, 0
        %p728 = scmp.lt.s32.totalorder %s727, 0
        %s729 = scalar_select %p728, %s727, 0
        %p730 = scmp.gt.s32.totalorder %s35, 0
        %s731 = scalar_select %p730, %s35, 0
        %p732 = scmp.lt.s32.totalorder %s731, 1
        %s733 = scalar_select %p732, %s731, 1
        %p734 = scmp.lt.s32.totalorder %s733, 1
        %s735 = scalar_select %p734, %s733, 1
        %s736 = scalar_lea.vmem %s5, %s735
        %p737 = scmp.gt.s32.totalorder %s35, 0
        %s738 = scalar_select %p737, %s35, 0
        %p739 = scmp.lt.s32.totalorder %s738, 1
        %s740 = scalar_select %p739, %s738, 1
        %s741 = ssub.s32 %s35, 2
        %p742 = scmp.gt.s32.totalorder %s741, 0
        %s743 = scalar_select %p742, %s741, 0
        %p744 = scmp.lt.s32.totalorder %s743, 1
        %s745 = scalar_select %p744, %s743, 1
        %p746 = scmp.lt.s32.totalorder %s745, 1
        %s747 = scalar_select %p746, %s745, 1
        %s748 = scalar_lea.vmem %s6, %s747
        %s749 = ssub.s32 %s35, 2
        %p750 = scmp.gt.s32.totalorder %s749, 0
        %s751 = scalar_select %p750, %s749, 0
        %p752 = scmp.lt.s32.totalorder %s751, 1
        %s753 = scalar_select %p752, %s751, 1
        %s754 = ssub.s32 %s35, 4
        %p755 = scmp.gt.s32.totalorder %s754, 0
        %s756 = scalar_select %p755, %s754, 0
        %p757 = scmp.lt.s32.totalorder %s756, 1
        %s758 = scalar_select %p757, %s756, 1
        %p759 = scmp.lt.s32.totalorder %s758, 1
        %s760 = scalar_select %p759, %s758, 1
        %s761 = scalar_lea.vmem %s7, %s760
        %s762 = ssub.s32 %s35, 4
        %p763 = scmp.gt.s32.totalorder %s762, 0
        %s764 = scalar_select %p763, %s762, 0
        %p765 = scmp.lt.s32.totalorder %s764, 1
        %s766 = scalar_select %p765, %s764, 1
        %s767 = ssub.s32 %s35, 6
        %p768 = scmp.gt.s32.totalorder %s767, 0
        %s769 = scalar_select %p768, %s767, 0
        %p770 = scmp.lt.s32.totalorder %s769, 0
        %s771 = scalar_select %p770, %s769, 0
        %p772 = scmp.lt.s32.totalorder %s771, 0
        %s773 = scalar_select %p772, %s771, 0
        %s774 = scalar_lea.vmem %s8, %s773
        %s775 = ssub.s32 %s35, 6
        %p776 = scmp.gt.s32.totalorder %s775, 0
        %s777 = scalar_select %p776, %s775, 0
        %p778 = scmp.lt.s32.totalorder %s777, 0
        %s779 = scalar_select %p778, %s777, 0
        %s780 = ssub.s32 %s35, 6
        %p781 = scmp.gt.s32.totalorder %s780, 0
        %s782 = scalar_select %p781, %s780, 0
        %p783 = scmp.lt.s32.totalorder %s782, 0
        %s784 = scalar_select %p783, %s782, 0
        %p786 = scmp.ge.s32.totalorder %s35, 0
        %p787 = scmp.lt.s32.totalorder %s35, 2
        %p788 = pnand %p786, %p787
        %p789 = pneg %p788
        // Predicated region
        $region77: #{tpu_custom_call.1} parent=55 // pred_check
          _
        $region78: #{tpu_custom_call.1} parent=55 // pred_check_branch
          %791 = sbr.rel (%p788) target = $region80
        $region79: #{tpu_custom_call.1} parent=55 // pred_region
          %v792 = vld [vmem:[#allocation4] sm:$0xf]
          %v793 = vld [vmem:[%s599] sm:$0xf]
          %v794 = vld [vmem:[%s599 + $0x4] sm:$0xf]
          %v795 = vld [vmem:[%s599 + $0x8] sm:$0xf]
          %v796 = vld [vmem:[%s599 + $0xc] sm:$0xf]
          %v797 = vld [vmem:[%s599 + $0x10] sm:$0xf]
          %v798 = vld [vmem:[%s599 + $0x14] sm:$0xf]
          %v799 = vld [vmem:[%s599 + $0x18] sm:$0xf]
          %v800 = vld [vmem:[%s599 + $0x1c] sm:$0xf]
          %v801 = vld [vmem:[%s736] sm:$0x1]
          %v803 = vperm.slane %v801, 0
          %v813 = vunpack.c.l.b16 %v793
          %v814 = vunpack.c.l.b16 %v794
          %v815 = vunpack.c.l.b16 %v795
          %v816 = vunpack.c.l.b16 %v796
          %v817 = vunpack.c.l.b16 %v797
          %v818 = vunpack.c.l.b16 %v798
          %v819 = vunpack.c.l.b16 %v799
          %v820 = vunpack.c.l.b16 %v800
          %v821 = vpack.c.b16 %v814, %v813
          %v822 = vpack.c.b16 %v816, %v815
          %v823 = vpack.c.b16 %v818, %v817
          %v824 = vpack.c.b16 %v820, %v819
          %vm829 = vcmask 523264
          %v831 = vsel %vm829, %v792, 0
          %833 = vmatpush.bf16.msra.mxu0 0
          %834 = vmatpush.bf16.msra.mxu0 0
          %835 = vmatpush.bf16.msra.mxu0 0
          %836 = vmatpush.bf16.msra.mxu0 0
          %837 = vmatpush.bf16.msra.mxu0 %v824
          %838 = vmatpush.bf16.msra.mxu0 %v823
          %839 = vmatpush.bf16.msra.mxu0 %v822
          %840 = vmatpush.bf16.msra.mxu0 %v821
          %841 = vmatmul.bf16.gmra.mxu0 %v831
          %v842 = vpop.f32.mrf.mxu0
          %v843 = vadd.f32 %v803, %v842
          %v844 = vpop.f32.mrf.mxu0
          %845 = vdwg.mxu0
          %vm846 = vcmp.ge.f32.partialorder %v843, 0.0
          %v847 = vmul.f32 %v843, 0.2
          %v848 = vsel %vm846, %v843, %v847
          %v849 = vpack.c.bf16 %v848, %v848
          %s850 = smul.addr %s35, 4
          %s851 = scalar_lea.vmem [#allocation2], %s850
          %852 = vst [vmem:[%s851] sm:$0xf] %v849
        $region80: #{tpu_custom_call.1} parent=55 // pred_fallthru
          _
        %p853 = scmp.ge.s32.totalorder %s35, 2
        %p854 = scmp.lt.s32.totalorder %s35, 4
        %p855 = pnand %p853, %p854
        %p856 = pneg %p855
        // Predicated region
        $region81: #{tpu_custom_call.1} parent=55 // pred_check
          _
        $region82: #{tpu_custom_call.1} parent=55 // pred_check_branch
          %858 = sbr.rel (%p855) target = $region84
        $region83: #{tpu_custom_call.1} parent=55 // pred_region
          %v859 = vld [vmem:[%s609] sm:$0xf]
          %v860 = vld [vmem:[%s609 + $0x4] sm:$0xf]
          %v861 = vld [vmem:[%s609 + $0x8] sm:$0xf]
          %v862 = vld [vmem:[%s609 + $0xc] sm:$0xf]
          %v863 = vld [vmem:[%s609 + $0x10] sm:$0xf]
          %v864 = vld [vmem:[%s609 + $0x14] sm:$0xf]
          %v865 = vld [vmem:[%s609 + $0x18] sm:$0xf]
          %v866 = vld [vmem:[%s609 + $0x1c] sm:$0xf]
          %v867 = vld [vmem:[%s609 + $0x20] sm:$0xf]
          %v868 = vld [vmem:[%s609 + $0x24] sm:$0xf]
          %v869 = vld [vmem:[%s609 + $0x28] sm:$0xf]
          %v870 = vld [vmem:[%s609 + $0x2c] sm:$0xf]
          %v871 = vld [vmem:[%s609 + $0x30] sm:$0xf]
          %v872 = vld [vmem:[%s609 + $0x34] sm:$0xf]
          %v873 = vld [vmem:[%s609 + $0x38] sm:$0xf]
          %v874 = vld [vmem:[%s609 + $0x3c] sm:$0xf]
          %v875 = vld [vmem:[#allocation2] sm:$0xf]
          %v876 = vld [vmem:[%s609 + $0x40] sm:$0xf]
          %v877 = vld [vmem:[%s609 + $0x44] sm:$0xf]
          %v878 = vld [vmem:[%s609 + $0x48] sm:$0xf]
          %v879 = vld [vmem:[%s609 + $0x4c] sm:$0xf]
          %v880 = vld [vmem:[%s609 + $0x50] sm:$0xf]
          %v881 = vld [vmem:[%s609 + $0x54] sm:$0xf]
          %v882 = vld [vmem:[%s609 + $0x58] sm:$0xf]
          %v883 = vld [vmem:[%s609 + $0x5c] sm:$0xf]
          %v884 = vld [vmem:[%s609 + $0x60] sm:$0xf]
          %v885 = vld [vmem:[%s609 + $0x64] sm:$0xf]
          %v886 = vld [vmem:[%s609 + $0x68] sm:$0xf]
          %v887 = vld [vmem:[%s609 + $0x6c] sm:$0xf]
          %v888 = vld [vmem:[%s609 + $0x70] sm:$0xf]
          %v889 = vld [vmem:[%s609 + $0x74] sm:$0xf]
          %v890 = vld [vmem:[%s609 + $0x78] sm:$0xf]
          %v891 = vld [vmem:[%s609 + $0x7c] sm:$0xf]
          %s892 = scalar_lea.vmem [#allocation2], 4
          %v893 = vld [vmem:[%s892] sm:$0xf]
          %v910 = vunpack.c.l.b16 %v876
          %v911 = vunpack.c.l.b16 %v877
          %v912 = vunpack.c.l.b16 %v878
          %v913 = vunpack.c.l.b16 %v879
          %v914 = vunpack.c.l.b16 %v880
          %v915 = vunpack.c.l.b16 %v881
          %v916 = vunpack.c.l.b16 %v882
          %v917 = vunpack.c.l.b16 %v883
          %v918 = vunpack.c.l.b16 %v884
          %v919 = vunpack.c.l.b16 %v885
          %v920 = vunpack.c.l.b16 %v886
          %v921 = vunpack.c.l.b16 %v887
          %v922 = vunpack.c.l.b16 %v888
          %v923 = vunpack.c.l.b16 %v889
          %v924 = vunpack.c.l.b16 %v890
          %v925 = vunpack.c.l.b16 %v891
          %v926 = vpack.c.b16 %v911, %v910
          %v927 = vpack.c.b16 %v913, %v912
          %v928 = vpack.c.b16 %v915, %v914
          %v929 = vpack.c.b16 %v917, %v916
          %v930 = vpack.c.b16 %v919, %v918
          %v931 = vpack.c.b16 %v921, %v920
          %v932 = vpack.c.b16 %v923, %v922
          %v933 = vpack.c.b16 %v925, %v924
          %942 = vmatpush.bf16.msra.mxu0 %v933
          %943 = vmatpush.bf16.msra.mxu0 %v932
          %944 = vmatpush.bf16.msra.mxu0 %v931
          %945 = vmatpush.bf16.msra.mxu0 %v930
          %946 = vmatpush.bf16.msra.mxu0 %v929
          %947 = vmatpush.bf16.msra.mxu0 %v928
          %948 = vmatpush.bf16.msra.mxu0 %v927
          %949 = vmatpush.bf16.msra.mxu0 %v926
          %950 = vmatmul.bf16.gmra.mxu0 %v893
          %v951 = vpop.f32.mrf.mxu0
          %v952 = vadd.f32 0.0, %v951
          %v953 = vpop.f32.mrf.mxu0
          %954 = vdwg.mxu0
          %v971 = vunpack.c.l.b16 %v859
          %v972 = vunpack.c.l.b16 %v860
          %v973 = vunpack.c.l.b16 %v861
          %v974 = vunpack.c.l.b16 %v862
          %v975 = vunpack.c.l.b16 %v863
          %v976 = vunpack.c.l.b16 %v864
          %v977 = vunpack.c.l.b16 %v865
          %v978 = vunpack.c.l.b16 %v866
          %v979 = vunpack.c.l.b16 %v867
          %v980 = vunpack.c.l.b16 %v868
          %v981 = vunpack.c.l.b16 %v869
          %v982 = vunpack.c.l.b16 %v870
          %v983 = vunpack.c.l.b16 %v871
          %v984 = vunpack.c.l.b16 %v872
          %v985 = vunpack.c.l.b16 %v873
          %v986 = vunpack.c.l.b16 %v874
          %v987 = vpack.c.b16 %v972, %v971
          %v988 = vpack.c.b16 %v974, %v973
          %v989 = vpack.c.b16 %v976, %v975
          %v990 = vpack.c.b16 %v978, %v977
          %v991 = vpack.c.b16 %v980, %v979
          %v992 = vpack.c.b16 %v982, %v981
          %v993 = vpack.c.b16 %v984, %v983
          %v994 = vpack.c.b16 %v986, %v985
          %1003 = vmatpush.bf16.msra.mxu0 %v994
          %1004 = vmatpush.bf16.msra.mxu0 %v993
          %1005 = vmatpush.bf16.msra.mxu0 %v992
          %1006 = vmatpush.bf16.msra.mxu0 %v991
          %1007 = vmatpush.bf16.msra.mxu0 %v990
          %1008 = vmatpush.bf16.msra.mxu0 %v989
          %1009 = vmatpush.bf16.msra.mxu0 %v988
          %1010 = vmatpush.bf16.msra.mxu0 %v987
          %1011 = vmatmul.bf16.gmra.mxu0 %v875
          %v1012 = vpop.f32.mrf.mxu0
          %v1013 = vadd.f32 %v952, %v1012
          %v1014 = vpop.f32.mrf.mxu0
          %1015 = vdwg.mxu0
          %v1016 = vld [vmem:[%s748] sm:$0x1]
          %v1018 = vperm.slane %v1016, 0
          %v1020 = vadd.f32 %v1013, %v1018
          %vm1021 = vcmp.ge.f32.partialorder %v1020, 0.0
          %v1022 = vmul.f32 %v1020, 0.2
          %v1023 = vsel %vm1021, %v1020, %v1022
          %v1024 = vpack.c.bf16 %v1023, %v1023
          %s1025 = ssub.s32 %s35, 2
          %s1026 = smul.addr %s1025, 4
          %s1027 = scalar_lea.vmem [#allocation3], %s1026
          %1028 = vst [vmem:[%s1027] sm:$0xf] %v1024
        $region84: #{tpu_custom_call.1} parent=55 // pred_fallthru
          _
        %p1029 = scmp.ge.s32.totalorder %s35, 4
        %p1030 = scmp.lt.s32.totalorder %s35, 6
        %p1031 = pnand %p1029, %p1030
        %p1032 = pneg %p1031
        // Predicated region
        $region85: #{tpu_custom_call.1} parent=55 // pred_check
          _
        $region86: #{tpu_custom_call.1} parent=55 // pred_check_branch
          %1034 = sbr.rel (%p1031) target = $region88
        $region87: #{tpu_custom_call.1} parent=55 // pred_region
          %v1035 = vld [vmem:[%s619] sm:$0xf]
          %v1036 = vld [vmem:[%s619 + $0x4] sm:$0xf]
          %v1037 = vld [vmem:[%s619 + $0x8] sm:$0xf]
          %v1038 = vld [vmem:[%s619 + $0xc] sm:$0xf]
          %v1039 = vld [vmem:[%s619 + $0x10] sm:$0xf]
          %v1040 = vld [vmem:[%s619 + $0x14] sm:$0xf]
          %v1041 = vld [vmem:[%s619 + $0x18] sm:$0xf]
          %v1042 = vld [vmem:[%s619 + $0x1c] sm:$0xf]
          %v1043 = vld [vmem:[%s619 + $0x20] sm:$0xf]
          %v1044 = vld [vmem:[%s619 + $0x24] sm:$0xf]
          %v1045 = vld [vmem:[%s619 + $0x28] sm:$0xf]
          %v1046 = vld [vmem:[%s619 + $0x2c] sm:$0xf]
          %v1047 = vld [vmem:[%s619 + $0x30] sm:$0xf]
          %v1048 = vld [vmem:[%s619 + $0x34] sm:$0xf]
          %v1049 = vld [vmem:[%s619 + $0x38] sm:$0xf]
          %v1050 = vld [vmem:[%s619 + $0x3c] sm:$0xf]
          %v1051 = vld [vmem:[#allocation3] sm:$0xf]
          %v1052 = vld [vmem:[%s619 + $0x40] sm:$0xf]
          %v1053 = vld [vmem:[%s619 + $0x44] sm:$0xf]
          %v1054 = vld [vmem:[%s619 + $0x48] sm:$0xf]
          %v1055 = vld [vmem:[%s619 + $0x4c] sm:$0xf]
          %v1056 = vld [vmem:[%s619 + $0x50] sm:$0xf]
          %v1057 = vld [vmem:[%s619 + $0x54] sm:$0xf]
          %v1058 = vld [vmem:[%s619 + $0x58] sm:$0xf]
          %v1059 = vld [vmem:[%s619 + $0x5c] sm:$0xf]
          %v1060 = vld [vmem:[%s619 + $0x60] sm:$0xf]
          %v1061 = vld [vmem:[%s619 + $0x64] sm:$0xf]
          %v1062 = vld [vmem:[%s619 + $0x68] sm:$0xf]
          %v1063 = vld [vmem:[%s619 + $0x6c] sm:$0xf]
          %v1064 = vld [vmem:[%s619 + $0x70] sm:$0xf]
          %v1065 = vld [vmem:[%s619 + $0x74] sm:$0xf]
          %v1066 = vld [vmem:[%s619 + $0x78] sm:$0xf]
          %v1067 = vld [vmem:[%s619 + $0x7c] sm:$0xf]
          %s1068 = scalar_lea.vmem [#allocation3], 4
          %v1069 = vld [vmem:[%s1068] sm:$0xf]
          %v1086 = vunpack.c.l.b16 %v1052
          %v1087 = vunpack.c.l.b16 %v1053
          %v1088 = vunpack.c.l.b16 %v1054
          %v1089 = vunpack.c.l.b16 %v1055
          %v1090 = vunpack.c.l.b16 %v1056
          %v1091 = vunpack.c.l.b16 %v1057
          %v1092 = vunpack.c.l.b16 %v1058
          %v1093 = vunpack.c.l.b16 %v1059
          %v1094 = vunpack.c.l.b16 %v1060
          %v1095 = vunpack.c.l.b16 %v1061
          %v1096 = vunpack.c.l.b16 %v1062
          %v1097 = vunpack.c.l.b16 %v1063
          %v1098 = vunpack.c.l.b16 %v1064
          %v1099 = vunpack.c.l.b16 %v1065
          %v1100 = vunpack.c.l.b16 %v1066
          %v1101 = vunpack.c.l.b16 %v1067
          %v1102 = vpack.c.b16 %v1087, %v1086
          %v1103 = vpack.c.b16 %v1089, %v1088
          %v1104 = vpack.c.b16 %v1091, %v1090
          %v1105 = vpack.c.b16 %v1093, %v1092
          %v1106 = vpack.c.b16 %v1095, %v1094
          %v1107 = vpack.c.b16 %v1097, %v1096
          %v1108 = vpack.c.b16 %v1099, %v1098
          %v1109 = vpack.c.b16 %v1101, %v1100
          %1118 = vmatpush.bf16.msra.mxu0 %v1109
          %1119 = vmatpush.bf16.msra.mxu0 %v1108
          %1120 = vmatpush.bf16.msra.mxu0 %v1107
          %1121 = vmatpush.bf16.msra.mxu0 %v1106
          %1122 = vmatpush.bf16.msra.mxu0 %v1105
          %1123 = vmatpush.bf16.msra.mxu0 %v1104
          %1124 = vmatpush.bf16.msra.mxu0 %v1103
          %1125 = vmatpush.bf16.msra.mxu0 %v1102
          %1126 = vmatmul.bf16.gmra.mxu0 %v1069
          %v1127 = vpop.f32.mrf.mxu0
          %v1128 = vadd.f32 0.0, %v1127
          %v1129 = vpop.f32.mrf.mxu0
          %1130 = vdwg.mxu0
          %v1147 = vunpack.c.l.b16 %v1035
          %v1148 = vunpack.c.l.b16 %v1036
          %v1149 = vunpack.c.l.b16 %v1037
          %v1150 = vunpack.c.l.b16 %v1038
          %v1151 = vunpack.c.l.b16 %v1039
          %v1152 = vunpack.c.l.b16 %v1040
          %v1153 = vunpack.c.l.b16 %v1041
          %v1154 = vunpack.c.l.b16 %v1042
          %v1155 = vunpack.c.l.b16 %v1043
          %v1156 = vunpack.c.l.b16 %v1044
          %v1157 = vunpack.c.l.b16 %v1045
          %v1158 = vunpack.c.l.b16 %v1046
          %v1159 = vunpack.c.l.b16 %v1047
          %v1160 = vunpack.c.l.b16 %v1048
          %v1161 = vunpack.c.l.b16 %v1049
          %v1162 = vunpack.c.l.b16 %v1050
          %v1163 = vpack.c.b16 %v1148, %v1147
          %v1164 = vpack.c.b16 %v1150, %v1149
          %v1165 = vpack.c.b16 %v1152, %v1151
          %v1166 = vpack.c.b16 %v1154, %v1153
          %v1167 = vpack.c.b16 %v1156, %v1155
          %v1168 = vpack.c.b16 %v1158, %v1157
          %v1169 = vpack.c.b16 %v1160, %v1159
          %v1170 = vpack.c.b16 %v1162, %v1161
          %1179 = vmatpush.bf16.msra.mxu0 %v1170
          %1180 = vmatpush.bf16.msra.mxu0 %v1169
          %1181 = vmatpush.bf16.msra.mxu0 %v1168
          %1182 = vmatpush.bf16.msra.mxu0 %v1167
          %1183 = vmatpush.bf16.msra.mxu0 %v1166
          %1184 = vmatpush.bf16.msra.mxu0 %v1165
          %1185 = vmatpush.bf16.msra.mxu0 %v1164
          %1186 = vmatpush.bf16.msra.mxu0 %v1163
          %1187 = vmatmul.bf16.gmra.mxu0 %v1051
          %v1188 = vpop.f32.mrf.mxu0
          %v1189 = vadd.f32 %v1128, %v1188
          %v1190 = vpop.f32.mrf.mxu0
          %1191 = vdwg.mxu0
          %v1192 = vld [vmem:[%s761] sm:$0x1]
          %v1194 = vperm.slane %v1192, 0
          %v1196 = vadd.f32 %v1189, %v1194
          %vm1197 = vcmp.ge.f32.partialorder %v1196, 0.0
          %v1198 = vmul.f32 %v1196, 0.2
          %v1199 = vsel %vm1197, %v1196, %v1198
          %v1200 = vpack.c.bf16 %v1199, %v1199
          %s1201 = ssub.s32 %s35, 4
          %s1202 = smul.addr %s1201, 4
          %s1203 = scalar_lea.vmem [#allocation2], %s1202
          %1204 = vst [vmem:[%s1203] sm:$0xf] %v1200
        $region88: #{tpu_custom_call.1} parent=55 // pred_fallthru
          _
        %p1205 = scmp.ge.s32.totalorder %s35, 6
        %p1206 = scmp.lt.s32.totalorder %s35, 7
        %p1207 = pnand %p1205, %p1206
        %p1208 = pneg %p1207
        // Predicated region
        $region89: #{tpu_custom_call.1} parent=55 // pred_check
          _
        $region90: #{tpu_custom_call.1} parent=55 // pred_check_branch
          %1210 = sbr.rel (%p1207) target = $region92
        $region91: #{tpu_custom_call.1} parent=55 // pred_region
          %v1211 = vld [vmem:[%s629] sm:$0xf]
          %v1212 = vld [vmem:[%s629 + $0x4] sm:$0xf]
          %v1213 = vld [vmem:[%s629 + $0x8] sm:$0xf]
          %v1214 = vld [vmem:[%s629 + $0xc] sm:$0xf]
          %v1215 = vld [vmem:[%s629 + $0x10] sm:$0xf]
          %v1216 = vld [vmem:[%s629 + $0x14] sm:$0xf]
          %v1217 = vld [vmem:[%s629 + $0x18] sm:$0xf]
          %v1218 = vld [vmem:[%s629 + $0x1c] sm:$0xf]
          %v1219 = vld [vmem:[%s629 + $0x20] sm:$0xf]
          %v1220 = vld [vmem:[%s629 + $0x24] sm:$0xf]
          %v1221 = vld [vmem:[%s629 + $0x28] sm:$0xf]
          %v1222 = vld [vmem:[%s629 + $0x2c] sm:$0xf]
          %v1223 = vld [vmem:[%s629 + $0x30] sm:$0xf]
          %v1224 = vld [vmem:[%s629 + $0x34] sm:$0xf]
          %v1225 = vld [vmem:[%s629 + $0x38] sm:$0xf]
          %v1226 = vld [vmem:[%s629 + $0x3c] sm:$0xf]
          %v1227 = vld [vmem:[#allocation2] sm:$0xf]
          %v1228 = vld [vmem:[%s629 + $0x40] sm:$0xf]
          %v1229 = vld [vmem:[%s629 + $0x44] sm:$0xf]
          %v1230 = vld [vmem:[%s629 + $0x48] sm:$0xf]
          %v1231 = vld [vmem:[%s629 + $0x4c] sm:$0xf]
          %v1232 = vld [vmem:[%s629 + $0x50] sm:$0xf]
          %v1233 = vld [vmem:[%s629 + $0x54] sm:$0xf]
          %v1234 = vld [vmem:[%s629 + $0x58] sm:$0xf]
          %v1235 = vld [vmem:[%s629 + $0x5c] sm:$0xf]
          %v1236 = vld [vmem:[%s629 + $0x60] sm:$0xf]
          %v1237 = vld [vmem:[%s629 + $0x64] sm:$0xf]
          %v1238 = vld [vmem:[%s629 + $0x68] sm:$0xf]
          %v1239 = vld [vmem:[%s629 + $0x6c] sm:$0xf]
          %v1240 = vld [vmem:[%s629 + $0x70] sm:$0xf]
          %v1241 = vld [vmem:[%s629 + $0x74] sm:$0xf]
          %v1242 = vld [vmem:[%s629 + $0x78] sm:$0xf]
          %v1243 = vld [vmem:[%s629 + $0x7c] sm:$0xf]
          %s1244 = scalar_lea.vmem [#allocation2], 4
          %v1245 = vld [vmem:[%s1244] sm:$0xf]
          %v1262 = vunpack.c.l.b16 %v1228
          %v1263 = vunpack.c.l.b16 %v1229
          %v1264 = vunpack.c.l.b16 %v1230
          %v1265 = vunpack.c.l.b16 %v1231
          %v1266 = vunpack.c.l.b16 %v1232
          %v1267 = vunpack.c.l.b16 %v1233
          %v1268 = vunpack.c.l.b16 %v1234
          %v1269 = vunpack.c.l.b16 %v1235
          %v1270 = vunpack.c.l.b16 %v1236
          %v1271 = vunpack.c.l.b16 %v1237
          %v1272 = vunpack.c.l.b16 %v1238
          %v1273 = vunpack.c.l.b16 %v1239
          %v1274 = vunpack.c.l.b16 %v1240
          %v1275 = vunpack.c.l.b16 %v1241
          %v1276 = vunpack.c.l.b16 %v1242
          %v1277 = vunpack.c.l.b16 %v1243
          %v1278 = vpack.c.b16 %v1263, %v1262
          %v1279 = vpack.c.b16 %v1265, %v1264
          %v1280 = vpack.c.b16 %v1267, %v1266
          %v1281 = vpack.c.b16 %v1269, %v1268
          %v1282 = vpack.c.b16 %v1271, %v1270
          %v1283 = vpack.c.b16 %v1273, %v1272
          %v1284 = vpack.c.b16 %v1275, %v1274
          %v1285 = vpack.c.b16 %v1277, %v1276
          %1294 = vmatpush.bf16.msra.mxu0 %v1285
          %1295 = vmatpush.bf16.msra.mxu0 %v1284
          %1296 = vmatpush.bf16.msra.mxu0 %v1283
          %1297 = vmatpush.bf16.msra.mxu0 %v1282
          %1298 = vmatpush.bf16.msra.mxu0 %v1281
          %1299 = vmatpush.bf16.msra.mxu0 %v1280
          %1300 = vmatpush.bf16.msra.mxu0 %v1279
          %1301 = vmatpush.bf16.msra.mxu0 %v1278
          %1302 = vmatmul.bf16.gmra.mxu0 %v1245
          %v1303 = vpop.f32.mrf.mxu0
          %v1304 = vadd.f32 0.0, %v1303
          %v1305 = vpop.f32.mrf.mxu0
          %1306 = vdwg.mxu0
          %v1323 = vunpack.c.l.b16 %v1211
          %v1324 = vunpack.c.l.b16 %v1212
          %v1325 = vunpack.c.l.b16 %v1213
          %v1326 = vunpack.c.l.b16 %v1214
          %v1327 = vunpack.c.l.b16 %v1215
          %v1328 = vunpack.c.l.b16 %v1216
          %v1329 = vunpack.c.l.b16 %v1217
          %v1330 = vunpack.c.l.b16 %v1218
          %v1331 = vunpack.c.l.b16 %v1219
          %v1332 = vunpack.c.l.b16 %v1220
          %v1333 = vunpack.c.l.b16 %v1221
          %v1334 = vunpack.c.l.b16 %v1222
          %v1335 = vunpack.c.l.b16 %v1223
          %v1336 = vunpack.c.l.b16 %v1224
          %v1337 = vunpack.c.l.b16 %v1225
          %v1338 = vunpack.c.l.b16 %v1226
          %v1339 = vpack.c.b16 %v1324, %v1323
          %v1340 = vpack.c.b16 %v1326, %v1325
          %v1341 = vpack.c.b16 %v1328, %v1327
          %v1342 = vpack.c.b16 %v1330, %v1329
          %v1343 = vpack.c.b16 %v1332, %v1331
          %v1344 = vpack.c.b16 %v1334, %v1333
          %v1345 = vpack.c.b16 %v1336, %v1335
          %v1346 = vpack.c.b16 %v1338, %v1337
          %1355 = vmatpush.bf16.msra.mxu0 %v1346
          %1356 = vmatpush.bf16.msra.mxu0 %v1345
          %1357 = vmatpush.bf16.msra.mxu0 %v1344
          %1358 = vmatpush.bf16.msra.mxu0 %v1343
          %1359 = vmatpush.bf16.msra.mxu0 %v1342
          %1360 = vmatpush.bf16.msra.mxu0 %v1341
          %1361 = vmatpush.bf16.msra.mxu0 %v1340
          %1362 = vmatpush.bf16.msra.mxu0 %v1339
          %1363 = vmatmul.bf16.gmra.mxu0 %v1227
          %v1364 = vpop.f32.mrf.mxu0
          %v1365 = vadd.f32 %v1304, %v1364
          %v1366 = vpop.f32.mrf.mxu0
          %1367 = vdwg.mxu0
          %v1368 = vld [vmem:[%s774] sm:$0x1]
          %v1370 = vperm.slane %v1368, 0
          %v1372 = vadd.f32 %v1365, %v1370
          %1373 = vst [vmem:[%s710] sm:$0xff] %v1372
        $region92: #{tpu_custom_call.1} parent=55 // pred_fallthru
          _
        %s1374 = sand.u32 %s372, 1
        %s1375 = scalar_lea.sflag [#allocation6], %s1374
        %s1376 = sand.u32 %s372, 1
        %s1377 = smul.addr %s1376, 8
        %s1378 = scalar_lea.vmem [#allocation13], %s1377
        // Predicated region
        $region93: #{tpu_custom_call.1} parent=55 // pred_check
          %p1379 = pneg %p382
        $region94: #{tpu_custom_call.1} parent=55 // pred_check_branch
          %1381 = sbr.rel (%p1379) target = $region96
        $region95: #{tpu_custom_call.1} parent=55 // pred_region
          %s1382 = ssub.s32 %s35, 6
          %p1383 = scmp.gt.s32.totalorder %s1382, 0
          %s1384 = scalar_select %p1383, %s1382, 0
          %p1385 = scmp.lt.s32.totalorder %s1384, 0
          %s1386 = scalar_select %p1385, %s1384, 0
          %1388 = vsyncadd %s1375, 0
          %s1389 = sadd.s32 %s1386, %s34
          %s1390 = smul.addr %s1389, 8
          %s1391 = scalar_lea.hbm %s9, %s1390
          %s1393 = sshll.u32 %s1378, 4
          %s1394 = int_to_ptr.vmem [resolvable:$true] %s1393
          %s1395 = sshll.u32 %s1391, 4
          %s1396 = int_to_ptr.hbm [resolvable:$true] %s1395
          %1398 = dma.vmem_to_hbm [thread:$0]  %s1394, 128, %s1396, %s1375
        $region96: #{tpu_custom_call.1} parent=55 // pred_fallthru
          _
      $region56: #{tpu_custom_call.1} parent=5 // pred_fallthru
        _
      %p1399 = scmp.le.s32.totalorder 2, %s25
      // Predicated region
      $region97: #{tpu_custom_call.1} parent=5 // pred_check
        %p1400 = pneg %p1399
      $region98: #{tpu_custom_call.1} parent=5 // pred_check_branch
        %1402 = sbr.rel (%p1400) target = $region100
      $region99: #{tpu_custom_call.1} parent=5 // pred_region
        %s1403 = ssub.s32 %s25, 2
        // Predicated region
        $region101: #{tpu_custom_call.1} parent=99 // pred_check
          %p1404 = pneg %p388
        $region102: #{tpu_custom_call.1} parent=99 // pred_check_branch
          %1406 = sbr.rel (%p1404) target = $region104
        $region103: #{tpu_custom_call.1} parent=99 // pred_region
          %s1407 = sand.u32 %s373, 1
          %s1408 = scalar_lea.sflag [#allocation6], %s1407
          %s1409 = sand.u32 %s373, 1
          %s1410 = smul.addr %s1409, 8
          %s1411 = scalar_lea.vmem [#allocation13], %s1410
          %1413 = dma.done %s1408, 128
        $region104: #{tpu_custom_call.1} parent=99 // pred_fallthru
          _
      $region100: #{tpu_custom_call.1} parent=5 // pred_fallthru
        _
    $region6: #{tpu_custom_call.1} parent=1 // loop_footer
      %s29 = sadd.s32 1, %s25
    $region7: #{tpu_custom_call.1} parent=1 // loop_footer_branch
      %24 = sbr.rel target = $region3
    $region8: #{tpu_custom_call.1} parent=1 // loop_exit
      _
    %1414 = vsyncpa [#allocation5], 1
    %s1415 = scalar_lea.sflag [#allocation5], 1
    %1416 = vsyncpa %s1415, 1
    %1417 = vsyncpa [#allocation8], 1
    %s1418 = scalar_lea.sflag [#allocation8], 1
    %1419 = vsyncpa %s1418, 1
    %1420 = vsyncpa [#allocation11], 1
    %s1421 = scalar_lea.sflag [#allocation11], 1
    %1422 = vsyncpa %s1421, 1
    %1423 = vsyncpa [#allocation6], 1
    %s1424 = scalar_lea.sflag [#allocation6], 1
    %1425 = vsyncpa %s1424, 1

</llo_original>
